<compile_context>
chip_gen: v7x
topology: tpu7x:2x2x1
jax: 0.10.0
libtpu: 0.0.40
codegen_flags: <defaults>
</compile_context>

<pallas_src>
import numpy as np
import jax
import jax.numpy as jnp
from jax import lax
from jax.experimental import pallas as pl
from jax.experimental.pallas import tpu as pltpu

HIDDEN_DIM = 32            # hidden_dim of the PyTorch module
NUM_SLOT = 8
MAX_LEN = 8
BATCH = 2
H_DIR = HIDDEN_DIM // 2    # per-direction LSTM hidden size
D_IN = HIDDEN_DIM * 2      # LSTM input feature size


def slot_decoder_kernel(lens_ref, x_ref, w_in_ref, b_in_ref, w_rec_ref,
                        wlin_ref, blin_ref, out_ref, fwd_scr, bwd_scr):
    B, T, D2 = x_ref.shape           # x_cat: (B, T, 2*D_IN) = [x_t | x_{T-1-t}]
    h2 = w_rec_ref.shape[0]          # 2h  = fused [fwd | bwd] hidden width (32)
    h = h2 // 2                      # per-direction hidden (16)

    lens = lens_ref[...]             # (B, 1) int32 sequence lengths

    # One MXU pass for all input projections (both directions, all timesteps).
    # Row (b, s): fwd-gate lanes use x[b, s], bwd-gate lanes use x[b, T-1-s].
    xc = x_ref[...].reshape(B * T, D2)
    pre = jnp.dot(xc, w_in_ref[...], preferred_element_type=jnp.float32) + b_in_ref[...]
    pre = pre.reshape(B, T, 4 * h2)  # (B, T, 128)

    # Hoisted loop invariants.
    w_rec = w_rec_ref[...]                                        # (2h, 8h) block-diag
    lane = lax.broadcasted_iota(jnp.int32, (1, h2), 1)
    fwd_lane = lane < h                                           # forward-half state lanes

    h_st = jnp.zeros((B, h2), jnp.float32)
    c_st = jnp.zeros((B, h2), jnp.float32)

    # Fully unrolled fused recurrence: step s advances fwd at time s, bwd at time T-1-s.
    for s in range(T):
        gates = pre[:, s, :] + jnp.dot(h_st, w_rec,
                                       preferred_element_type=jnp.float32)   # (B, 128)
        sg = jax.nn.sigmoid(gates)                                # one wide EUP op
        th = jnp.tanh(gates)                                      # one wide EUP op
        i_g = sg[:, 0:h2]
        f_g = sg[:, h2:2 * h2]
        g_g = th[:, 2 * h2:3 * h2]
        o_g = sg[:, 3 * h2:4 * h2]
        c_new = f_g * c_st + i_g * g_g
        h_new = o_g * jnp.tanh(c_new)

        # Backward step is real only while its time index T-1-s is inside the packed
        # length; otherwise freeze (keeps the bwd state at its zero init).
        bwd_valid = (T - 1 - s) < lens                            # (B, 1)
        keep = jnp.logical_or(fwd_lane, bwd_valid)                # (B, 2h)
        h_st = jnp.where(keep, h_new, h_st)
        c_st = jnp.where(keep, c_new, c_st)

        # pad_packed_sequence: fwd outputs past seq_len are zero; bwd half is already
        # zero on padded steps (frozen at init).
        fwd_pad = jnp.logical_and(fwd_lane, s >= lens)            # (B, 2h)
        fwd_scr[s] = jnp.where(fwd_pad, 0.0, h_st)                # fwd half valid at time s
        bwd_scr[T - 1 - s] = h_st                                 # bwd half valid at time T-1-s

    # Final linear for the whole batch in one shot (dropout == identity at inference).
    # Split the 2h contraction so no lane-concatenate of the two 16-wide halves is needed.
    seq_f = fwd_scr[...][..., :h].reshape(T * B, h)               # time-major rows
    seq_b = bwd_scr[...][..., h:].reshape(T * B, h)
    wl = wlin_ref[...]                                            # (2h, 128) zero-padded
    out_ref[...] = (jnp.dot(seq_f, wl[:h, :], preferred_element_type=jnp.float32)
                    + jnp.dot(seq_b, wl[h:, :], preferred_element_type=jnp.float32)
                    + blin_ref[...])                              # (T*B, 128) lane-dense store


def slot_decoder(x, lens, params):
    B, T, D = x.shape
    h = params["whh_f"].shape[0]
    S = params["wlin"].shape[1]
    S_PAD = 128                      # lane-dense output; sliced back to S below

    def interleave(a_f, a_b):
        # (R, 4h) x2 -> (R, 8h) with column blocks [i_f,i_b,f_f,f_b,g_f,g_b,o_f,o_b]
        R = a_f.shape[0]
        return jnp.stack([a_f.reshape(R, 4, h), a_b.reshape(R, 4, h)], axis=2).reshape(R, 8 * h)

    zD = jnp.zeros((D, 4 * h), jnp.float32)
    zh = jnp.zeros((h, 4 * h), jnp.float32)
    # Input weight: rows 0:D act on x[t] (fwd gate columns), rows D:2D act on x[T-1-t]
    # (bwd gate columns).  Recurrent weight: block-diagonal over the [fwd | bwd] state.
    w_in = jnp.concatenate([interleave(params["wih_f"], zD),
                            interleave(zD, params["wih_b"])], axis=0)      # (2D, 8h) = (128,128)
    w_rec = jnp.concatenate([interleave(params["whh_f"], zh),
                             interleave(zh, params["whh_b"])], axis=0)     # (2h, 8h) = (32,128)
    b_in = interleave(params["bf"], params["bb"])                          # (1, 8h)

    wlin_pad = jnp.pad(params["wlin"].astype(jnp.float32), ((0, 0), (0, S_PAD - S)))
    blin_pad = jnp.pad(params["blin"].astype(jnp.float32), ((0, 0), (0, S_PAD - S)))

    # Layout plumbing in the wrapper: pair x[t] with x[T-1-t] so the kernel needs no flips.
    x_cat = jnp.concatenate([x.astype(jnp.float32), jnp.flip(x, axis=1).astype(jnp.float32)],
                            axis=-1)                                       # (B, T, 2D) = (B,T,128)
    lens2 = lens.reshape(B, 1).astype(jnp.int32)

    vspec = pl.BlockSpec(memory_space=pltpu.MemorySpace.VMEM)
    out = pl.pallas_call(
        slot_decoder_kernel,
        out_shape=jax.ShapeDtypeStruct((T * B, S_PAD), jnp.float32),
        in_specs=[vspec, vspec, vspec, vspec, vspec, vspec, vspec],
        out_specs=vspec,
        scratch_shapes=[pltpu.VMEM((T, B, 2 * h), jnp.float32),   # fwd outputs (time-major)
                        pltpu.VMEM((T, B, 2 * h), jnp.float32)],  # bwd outputs (time-major)
    )(lens2, x_cat, w_in, b_in, w_rec, wlin_pad, blin_pad)

    # (T*B, 128) time-major -> (B, T, NUM_SLOT)
    return jnp.transpose(out.reshape(T, B, S_PAD), (1, 0, 2))[:, :, :S]


# ---------------- pure-numpy reference (mirrors PyTorch semantics) ----------------
def _sigmoid(z):
    return 1.0 / (1.0 + np.exp(-z))


def ref_forward(x, lens, p):
    B, T, _ = x.shape
    h = p["whh_f"].shape[0]
    seq_out = np.zeros((B, T, 2 * h), np.float32)
    for b in range(B):
        L = int(lens[b])
        hs = np.zeros(h, np.float32); cs = np.zeros(h, np.float32)
        for t in range(L):
            g = x[b, t] @ p["wih_f"] + p["bf"][0] + hs @ p["whh_f"]
            i = _sigmoid(g[0:h]); f = _sigmoid(g[h:2 * h])
            gg = np.tanh(g[2 * h:3 * h]); o = _sigmoid(g[3 * h:4 * h])
            cs = f * cs + i * gg; hs = o * np.tanh(cs)
            seq_out[b, t, :h] = hs
        hs = np.zeros(h, np.float32); cs = np.zeros(h, np.float32)
        for t in range(L - 1, -1, -1):
            g = x[b, t] @ p["wih_b"] + p["bb"][0] + hs @ p["whh_b"]
            i = _sigmoid(g[0:h]); f = _sigmoid(g[h:2 * h])
            gg = np.tanh(g[2 * h:3 * h]); o = _sigmoid(g[3 * h:4 * h])
            cs = f * cs + i * gg; hs = o * np.tanh(cs)
            seq_out[b, t, h:] = hs
    return seq_out @ p["wlin"] + p["blin"][0]


if __name__ == "__main__":
    key = jax.random.PRNGKey(0)
    ks = jax.random.split(key, 10)
    bound = 1.0 / np.sqrt(H_DIR)
    u = lambda kk, shape: jax.random.uniform(kk, shape, jnp.float32, -bound, bound)

    params = dict(
        wih_f=u(ks[0], (D_IN, 4 * H_DIR)),
        whh_f=u(ks[1], (H_DIR, 4 * H_DIR)),
        bf=u(ks[2], (1, 4 * H_DIR)),       # bias_ih + bias_hh folded together
        wih_b=u(ks[3], (D_IN, 4 * H_DIR)),
        whh_b=u(ks[4], (H_DIR, 4 * H_DIR)),
        bb=u(ks[5], (1, 4 * H_DIR)),
        wlin=u(ks[6], (HIDDEN_DIM, NUM_SLOT)),
        blin=u(ks[7], (1, NUM_SLOT)),
    )
    x = jax.random.normal(ks[8], (BATCH, MAX_LEN, D_IN), jnp.float32)
    lens = jnp.array([MAX_LEN, 5], dtype=jnp.int32)   # sorted descending (enforce_sorted=True)

    out = jax.block_until_ready(slot_decoder(x, lens, params))

    ref = ref_forward(np.asarray(x), np.asarray(lens),
                      {k: np.asarray(v) for k, v in params.items()})
    np.testing.assert_allclose(np.asarray(out), ref, rtol=2e-3, atol=2e-3)
    print("KERNEL_OK")
</pallas_src>

<mosaic_0001>
module attributes {stable_mosaic.version = 11 : i64} {
  func.func @slot_decoder_kernel(%arg0: memref<2x1xi32, #tpu.memory_space<vmem>>, %arg1: memref<2x8x128xf32, #tpu.memory_space<vmem>>, %arg2: memref<128x128xf32, #tpu.memory_space<vmem>>, %arg3: memref<1x128xf32, #tpu.memory_space<vmem>>, %arg4: memref<32x128xf32, #tpu.memory_space<vmem>>, %arg5: memref<32x128xf32, #tpu.memory_space<vmem>>, %arg6: memref<1x128xf32, #tpu.memory_space<vmem>>, %arg7: memref<16x128xf32, #tpu.memory_space<vmem>>, %arg8: memref<8x2x32xf32, #tpu.memory_space<vmem>>, %arg9: memref<8x2x32xf32, #tpu.memory_space<vmem>>) attributes {dimension_semantics = [], scalar_prefetch = 0 : i64, scratch_operands = 2 : i64, tpu.core_type = #tpu.core_type<tc>} {
    %c0 = arith.constant 0 : index
    %c0_0 = arith.constant 0 : index
    %0 = vector.load %arg0[%c0, %c0_0] : memref<2x1xi32, #tpu.memory_space<vmem>>, vector<2x1xi32>
    %c0_1 = arith.constant 0 : index
    %c0_2 = arith.constant 0 : index
    %c0_3 = arith.constant 0 : index
    %1 = vector.load %arg1[%c0_1, %c0_2, %c0_3] : memref<2x8x128xf32, #tpu.memory_space<vmem>>, vector<2x8x128xf32>
    %2 = vector.shape_cast %1 : vector<2x8x128xf32> to vector<16x128xf32>
    %c0_4 = arith.constant 0 : index
    %c0_5 = arith.constant 0 : index
    %3 = vector.load %arg2[%c0_4, %c0_5] : memref<128x128xf32, #tpu.memory_space<vmem>>, vector<128x128xf32>
    %cst = arith.constant dense<0.000000e+00> : vector<16x128xf32>
    %4 = tpu.matmul %2, %3, %cst {dimension_numbers = #tpu.dot_dimension_numbers<[1], [0], [0], [1], [0, 0, 1, 1], [], []>} : vector<16x128xf32>, vector<128x128xf32>, vector<16x128xf32> -> vector<16x128xf32>
    %c0_6 = arith.constant 0 : index
    %c0_7 = arith.constant 0 : index
    %5 = vector.load %arg3[%c0_6, %c0_7] : memref<1x128xf32, #tpu.memory_space<vmem>>, vector<1x128xf32>
    %6 = vector.broadcast %5 : vector<1x128xf32> to vector<16x128xf32>
    %7 = arith.addf %4, %6 : vector<16x128xf32>
    %8 = vector.shape_cast %7 : vector<16x128xf32> to vector<2x8x128xf32>
    %c0_8 = arith.constant 0 : index
    %c0_9 = arith.constant 0 : index
    %9 = vector.load %arg4[%c0_8, %c0_9] : memref<32x128xf32, #tpu.memory_space<vmem>>, vector<32x128xf32>
    %10 = tpu.iota {dimensions = array<i32: 1>} : vector<1x32xi32>
    %c16_i32 = arith.constant 16 : i32
    %11 = vector.broadcast %c16_i32 : i32 to vector<1x32xi32>
    %12 = arith.cmpi slt, %10, %11 : vector<1x32xi32>
    %cst_10 = arith.constant 0.000000e+00 : f32
    %13 = vector.broadcast %cst_10 : f32 to vector<2x32xf32>
    %cst_11 = arith.constant 0.000000e+00 : f32
    %14 = vector.broadcast %cst_11 : f32 to vector<2x32xf32>
    %15 = vector.extract_strided_slice %8 {offsets = [0, 0, 0], sizes = [2, 1, 128], strides = [1, 1, 1]} : vector<2x8x128xf32> to vector<2x1x128xf32>
    %16 = vector.shape_cast %15 : vector<2x1x128xf32> to vector<2x128xf32>
    %cst_12 = arith.constant dense<0.000000e+00> : vector<2x128xf32>
    %17 = tpu.matmul %13, %9, %cst_12 {dimension_numbers = #tpu.dot_dimension_numbers<[1], [0], [0], [1], [0, 0, 1, 1], [], []>} : vector<2x32xf32>, vector<32x128xf32>, vector<2x128xf32> -> vector<2x128xf32>
    %18 = arith.addf %16, %17 : vector<2x128xf32>
    %19 = arith.negf %18 : vector<2x128xf32>
    %20 = math.exp %19 : vector<2x128xf32>
    %cst_13 = arith.constant 1.000000e+00 : f32
    %21 = vector.broadcast %cst_13 : f32 to vector<2x128xf32>
    %22 = arith.addf %21, %20 : vector<2x128xf32>
    %23 = arith.divf %21, %22 : vector<2x128xf32>
    %24 = math.tanh %18 : vector<2x128xf32>
    %25 = vector.extract_strided_slice %23 {offsets = [0, 0], sizes = [2, 32], strides = [1, 1]} : vector<2x128xf32> to vector<2x32xf32>
    %26 = vector.extract_strided_slice %23 {offsets = [0, 32], sizes = [2, 32], strides = [1, 1]} : vector<2x128xf32> to vector<2x32xf32>
    %27 = vector.extract_strided_slice %24 {offsets = [0, 64], sizes = [2, 32], strides = [1, 1]} : vector<2x128xf32> to vector<2x32xf32>
    %28 = vector.extract_strided_slice %23 {offsets = [0, 96], sizes = [2, 32], strides = [1, 1]} : vector<2x128xf32> to vector<2x32xf32>
    %29 = arith.mulf %26, %14 : vector<2x32xf32>
    %30 = arith.mulf %25, %27 : vector<2x32xf32>
    %31 = arith.addf %29, %30 : vector<2x32xf32>
    %32 = math.tanh %31 : vector<2x32xf32>
    %33 = arith.mulf %28, %32 : vector<2x32xf32>
    %c7_i32 = arith.constant 7 : i32
    %34 = vector.broadcast %c7_i32 : i32 to vector<2x1xi32>
    %35 = arith.cmpi sgt, %0, %34 : vector<2x1xi32>
    %36 = vector.broadcast %12 : vector<1x32xi1> to vector<2x32xi1>
    %37 = vector.broadcast %35 : vector<2x1xi1> to vector<2x32xi1>
    %38 = arith.ori %36, %37 : vector<2x32xi1>
    %39 = arith.select %38, %33, %13 : vector<2x32xi1>, vector<2x32xf32>
    %40 = arith.select %38, %31, %14 : vector<2x32xi1>, vector<2x32xf32>
    %c0_i32 = arith.constant 0 : i32
    %41 = vector.broadcast %c0_i32 : i32 to vector<2x1xi32>
    %42 = arith.cmpi sle, %0, %41 : vector<2x1xi32>
    %43 = vector.broadcast %12 : vector<1x32xi1> to vector<2x32xi1>
    %44 = vector.broadcast %42 : vector<2x1xi1> to vector<2x32xi1>
    %45 = arith.andi %43, %44 : vector<2x32xi1>
    %cst_14 = arith.constant 0.000000e+00 : f32
    %46 = vector.broadcast %cst_14 : f32 to vector<2x32xf32>
    %47 = arith.select %45, %46, %39 : vector<2x32xi1>, vector<2x32xf32>
    %c0_15 = arith.constant 0 : index
    %c0_16 = arith.constant 0 : index
    %c0_17 = arith.constant 0 : index
    %48 = vector.load %arg8[%c0_15, %c0_16, %c0_17] : memref<8x2x32xf32, #tpu.memory_space<vmem>>, vector<1x2x32xf32>
    %49 = vector.shape_cast %48 : vector<1x2x32xf32> to vector<2x32xf32>
    %50 = vector.shape_cast %47 : vector<2x32xf32> to vector<1x2x32xf32>
    tpu.vector_store %arg8[%c0_15, %c0_16, %c0_17], %50 {strides = array<i32>} : memref<8x2x32xf32, #tpu.memory_space<vmem>>, vector<1x2x32xf32>,
    %c7 = arith.constant 7 : index
    %c0_18 = arith.constant 0 : index
    %c0_19 = arith.constant 0 : index
    %51 = vector.load %arg9[%c7, %c0_18, %c0_19] : memref<8x2x32xf32, #tpu.memory_space<vmem>>, vector<1x2x32xf32>
    %52 = vector.shape_cast %51 : vector<1x2x32xf32> to vector<2x32xf32>
    %53 = vector.shape_cast %39 : vector<2x32xf32> to vector<1x2x32xf32>
    tpu.vector_store %arg9[%c7, %c0_18, %c0_19], %53 {strides = array<i32>} : memref<8x2x32xf32, #tpu.memory_space<vmem>>, vector<1x2x32xf32>,
    %54 = vector.extract_strided_slice %8 {offsets = [0, 1, 0], sizes = [2, 1, 128], strides = [1, 1, 1]} : vector<2x8x128xf32> to vector<2x1x128xf32>
    %55 = vector.shape_cast %54 : vector<2x1x128xf32> to vector<2x128xf32>
    %cst_20 = arith.constant dense<0.000000e+00> : vector<2x128xf32>
    %56 = tpu.matmul %39, %9, %cst_20 {dimension_numbers = #tpu.dot_dimension_numbers<[1], [0], [0], [1], [0, 0, 1, 1], [], []>} : vector<2x32xf32>, vector<32x128xf32>, vector<2x128xf32> -> vector<2x128xf32>
    %57 = arith.addf %55, %56 : vector<2x128xf32>
    %58 = arith.negf %57 : vector<2x128xf32>
    %59 = math.exp %58 : vector<2x128xf32>
    %cst_21 = arith.constant 1.000000e+00 : f32
    %60 = vector.broadcast %cst_21 : f32 to vector<2x128xf32>
    %61 = arith.addf %60, %59 : vector<2x128xf32>
    %62 = arith.divf %60, %61 : vector<2x128xf32>
    %63 = math.tanh %57 : vector<2x128xf32>
    %64 = vector.extract_strided_slice %62 {offsets = [0, 0], sizes = [2, 32], strides = [1, 1]} : vector<2x128xf32> to vector<2x32xf32>
    %65 = vector.extract_strided_slice %62 {offsets = [0, 32], sizes = [2, 32], strides = [1, 1]} : vector<2x128xf32> to vector<2x32xf32>
    %66 = vector.extract_strided_slice %63 {offsets = [0, 64], sizes = [2, 32], strides = [1, 1]} : vector<2x128xf32> to vector<2x32xf32>
    %67 = vector.extract_strided_slice %62 {offsets = [0, 96], sizes = [2, 32], strides = [1, 1]} : vector<2x128xf32> to vector<2x32xf32>
    %68 = arith.mulf %65, %40 : vector<2x32xf32>
    %69 = arith.mulf %64, %66 : vector<2x32xf32>
    %70 = arith.addf %68, %69 : vector<2x32xf32>
    %71 = math.tanh %70 : vector<2x32xf32>
    %72 = arith.mulf %67, %71 : vector<2x32xf32>
    %c6_i32 = arith.constant 6 : i32
    %73 = vector.broadcast %c6_i32 : i32 to vector<2x1xi32>
    %74 = arith.cmpi sgt, %0, %73 : vector<2x1xi32>
    %75 = vector.broadcast %12 : vector<1x32xi1> to vector<2x32xi1>
    %76 = vector.broadcast %74 : vector<2x1xi1> to vector<2x32xi1>
    %77 = arith.ori %75, %76 : vector<2x32xi1>
    %78 = arith.select %77, %72, %39 : vector<2x32xi1>, vector<2x32xf32>
    %79 = arith.select %77, %70, %40 : vector<2x32xi1>, vector<2x32xf32>
    %c1_i32 = arith.constant 1 : i32
    %80 = vector.broadcast %c1_i32 : i32 to vector<2x1xi32>
    %81 = arith.cmpi sle, %0, %80 : vector<2x1xi32>
    %82 = vector.broadcast %12 : vector<1x32xi1> to vector<2x32xi1>
    %83 = vector.broadcast %81 : vector<2x1xi1> to vector<2x32xi1>
    %84 = arith.andi %82, %83 : vector<2x32xi1>
    %cst_22 = arith.constant 0.000000e+00 : f32
    %85 = vector.broadcast %cst_22 : f32 to vector<2x32xf32>
    %86 = arith.select %84, %85, %78 : vector<2x32xi1>, vector<2x32xf32>
    %c1 = arith.constant 1 : index
    %c0_23 = arith.constant 0 : index
    %c0_24 = arith.constant 0 : index
    %87 = vector.load %arg8[%c1, %c0_23, %c0_24] : memref<8x2x32xf32, #tpu.memory_space<vmem>>, vector<1x2x32xf32>
    %88 = vector.shape_cast %87 : vector<1x2x32xf32> to vector<2x32xf32>
    %89 = vector.shape_cast %86 : vector<2x32xf32> to vector<1x2x32xf32>
    tpu.vector_store %arg8[%c1, %c0_23, %c0_24], %89 {strides = array<i32>} : memref<8x2x32xf32, #tpu.memory_space<vmem>>, vector<1x2x32xf32>,
    %c6 = arith.constant 6 : index
    %c0_25 = arith.constant 0 : index
    %c0_26 = arith.constant 0 : index
    %90 = vector.load %arg9[%c6, %c0_25, %c0_26] : memref<8x2x32xf32, #tpu.memory_space<vmem>>, vector<1x2x32xf32>
    %91 = vector.shape_cast %90 : vector<1x2x32xf32> to vector<2x32xf32>
    %92 = vector.shape_cast %78 : vector<2x32xf32> to vector<1x2x32xf32>
    tpu.vector_store %arg9[%c6, %c0_25, %c0_26], %92 {strides = array<i32>} : memref<8x2x32xf32, #tpu.memory_space<vmem>>, vector<1x2x32xf32>,
    %93 = vector.extract_strided_slice %8 {offsets = [0, 2, 0], sizes = [2, 1, 128], strides = [1, 1, 1]} : vector<2x8x128xf32> to vector<2x1x128xf32>
    %94 = vector.shape_cast %93 : vector<2x1x128xf32> to vector<2x128xf32>
    %cst_27 = arith.constant dense<0.000000e+00> : vector<2x128xf32>
    %95 = tpu.matmul %78, %9, %cst_27 {dimension_numbers = #tpu.dot_dimension_numbers<[1], [0], [0], [1], [0, 0, 1, 1], [], []>} : vector<2x32xf32>, vector<32x128xf32>, vector<2x128xf32> -> vector<2x128xf32>
    %96 = arith.addf %94, %95 : vector<2x128xf32>
    %97 = arith.negf %96 : vector<2x128xf32>
    %98 = math.exp %97 : vector<2x128xf32>
    %cst_28 = arith.constant 1.000000e+00 : f32
    %99 = vector.broadcast %cst_28 : f32 to vector<2x128xf32>
    %100 = arith.addf %99, %98 : vector<2x128xf32>
    %101 = arith.divf %99, %100 : vector<2x128xf32>
    %102 = math.tanh %96 : vector<2x128xf32>
    %103 = vector.extract_strided_slice %101 {offsets = [0, 0], sizes = [2, 32], strides = [1, 1]} : vector<2x128xf32> to vector<2x32xf32>
    %104 = vector.extract_strided_slice %101 {offsets = [0, 32], sizes = [2, 32], strides = [1, 1]} : vector<2x128xf32> to vector<2x32xf32>
    %105 = vector.extract_strided_slice %102 {offsets = [0, 64], sizes = [2, 32], strides = [1, 1]} : vector<2x128xf32> to vector<2x32xf32>
    %106 = vector.extract_strided_slice %101 {offsets = [0, 96], sizes = [2, 32], strides = [1, 1]} : vector<2x128xf32> to vector<2x32xf32>
    %107 = arith.mulf %104, %79 : vector<2x32xf32>
    %108 = arith.mulf %103, %105 : vector<2x32xf32>
    %109 = arith.addf %107, %108 : vector<2x32xf32>
    %110 = math.tanh %109 : vector<2x32xf32>
    %111 = arith.mulf %106, %110 : vector<2x32xf32>
    %c5_i32 = arith.constant 5 : i32
    %112 = vector.broadcast %c5_i32 : i32 to vector<2x1xi32>
    %113 = arith.cmpi sgt, %0, %112 : vector<2x1xi32>
    %114 = vector.broadcast %12 : vector<1x32xi1> to vector<2x32xi1>
    %115 = vector.broadcast %113 : vector<2x1xi1> to vector<2x32xi1>
    %116 = arith.ori %114, %115 : vector<2x32xi1>
    %117 = arith.select %116, %111, %78 : vector<2x32xi1>, vector<2x32xf32>
    %118 = arith.select %116, %109, %79 : vector<2x32xi1>, vector<2x32xf32>
    %c2_i32 = arith.constant 2 : i32
    %119 = vector.broadcast %c2_i32 : i32 to vector<2x1xi32>
    %120 = arith.cmpi sle, %0, %119 : vector<2x1xi32>
    %121 = vector.broadcast %12 : vector<1x32xi1> to vector<2x32xi1>
    %122 = vector.broadcast %120 : vector<2x1xi1> to vector<2x32xi1>
    %123 = arith.andi %121, %122 : vector<2x32xi1>
    %cst_29 = arith.constant 0.000000e+00 : f32
    %124 = vector.broadcast %cst_29 : f32 to vector<2x32xf32>
    %125 = arith.select %123, %124, %117 : vector<2x32xi1>, vector<2x32xf32>
    %c2 = arith.constant 2 : index
    %c0_30 = arith.constant 0 : index
    %c0_31 = arith.constant 0 : index
    %126 = vector.load %arg8[%c2, %c0_30, %c0_31] : memref<8x2x32xf32, #tpu.memory_space<vmem>>, vector<1x2x32xf32>
    %127 = vector.shape_cast %126 : vector<1x2x32xf32> to vector<2x32xf32>
    %128 = vector.shape_cast %125 : vector<2x32xf32> to vector<1x2x32xf32>
    tpu.vector_store %arg8[%c2, %c0_30, %c0_31], %128 {strides = array<i32>} : memref<8x2x32xf32, #tpu.memory_space<vmem>>, vector<1x2x32xf32>,
    %c5 = arith.constant 5 : index
    %c0_32 = arith.constant 0 : index
    %c0_33 = arith.constant 0 : index
    %129 = vector.load %arg9[%c5, %c0_32, %c0_33] : memref<8x2x32xf32, #tpu.memory_space<vmem>>, vector<1x2x32xf32>
    %130 = vector.shape_cast %129 : vector<1x2x32xf32> to vector<2x32xf32>
    %131 = vector.shape_cast %117 : vector<2x32xf32> to vector<1x2x32xf32>
    tpu.vector_store %arg9[%c5, %c0_32, %c0_33], %131 {strides = array<i32>} : memref<8x2x32xf32, #tpu.memory_space<vmem>>, vector<1x2x32xf32>,
    %132 = vector.extract_strided_slice %8 {offsets = [0, 3, 0], sizes = [2, 1, 128], strides = [1, 1, 1]} : vector<2x8x128xf32> to vector<2x1x128xf32>
    %133 = vector.shape_cast %132 : vector<2x1x128xf32> to vector<2x128xf32>
    %cst_34 = arith.constant dense<0.000000e+00> : vector<2x128xf32>
    %134 = tpu.matmul %117, %9, %cst_34 {dimension_numbers = #tpu.dot_dimension_numbers<[1], [0], [0], [1], [0, 0, 1, 1], [], []>} : vector<2x32xf32>, vector<32x128xf32>, vector<2x128xf32> -> vector<2x128xf32>
    %135 = arith.addf %133, %134 : vector<2x128xf32>
    %136 = arith.negf %135 : vector<2x128xf32>
    %137 = math.exp %136 : vector<2x128xf32>
    %cst_35 = arith.constant 1.000000e+00 : f32
    %138 = vector.broadcast %cst_35 : f32 to vector<2x128xf32>
    %139 = arith.addf %138, %137 : vector<2x128xf32>
    %140 = arith.divf %138, %139 : vector<2x128xf32>
    %141 = math.tanh %135 : vector<2x128xf32>
    %142 = vector.extract_strided_slice %140 {offsets = [0, 0], sizes = [2, 32], strides = [1, 1]} : vector<2x128xf32> to vector<2x32xf32>
    %143 = vector.extract_strided_slice %140 {offsets = [0, 32], sizes = [2, 32], strides = [1, 1]} : vector<2x128xf32> to vector<2x32xf32>
    %144 = vector.extract_strided_slice %141 {offsets = [0, 64], sizes = [2, 32], strides = [1, 1]} : vector<2x128xf32> to vector<2x32xf32>
    %145 = vector.extract_strided_slice %140 {offsets = [0, 96], sizes = [2, 32], strides = [1, 1]} : vector<2x128xf32> to vector<2x32xf32>
    %146 = arith.mulf %143, %118 : vector<2x32xf32>
    %147 = arith.mulf %142, %144 : vector<2x32xf32>
    %148 = arith.addf %146, %147 : vector<2x32xf32>
    %149 = math.tanh %148 : vector<2x32xf32>
    %150 = arith.mulf %145, %149 : vector<2x32xf32>
    %c4_i32 = arith.constant 4 : i32
    %151 = vector.broadcast %c4_i32 : i32 to vector<2x1xi32>
    %152 = arith.cmpi sgt, %0, %151 : vector<2x1xi32>
    %153 = vector.broadcast %12 : vector<1x32xi1> to vector<2x32xi1>
    %154 = vector.broadcast %152 : vector<2x1xi1> to vector<2x32xi1>
    %155 = arith.ori %153, %154 : vector<2x32xi1>
    %156 = arith.select %155, %150, %117 : vector<2x32xi1>, vector<2x32xf32>
    %157 = arith.select %155, %148, %118 : vector<2x32xi1>, vector<2x32xf32>
    %c3_i32 = arith.constant 3 : i32
    %158 = vector.broadcast %c3_i32 : i32 to vector<2x1xi32>
    %159 = arith.cmpi sle, %0, %158 : vector<2x1xi32>
    %160 = vector.broadcast %12 : vector<1x32xi1> to vector<2x32xi1>
    %161 = vector.broadcast %159 : vector<2x1xi1> to vector<2x32xi1>
    %162 = arith.andi %160, %161 : vector<2x32xi1>
    %cst_36 = arith.constant 0.000000e+00 : f32
    %163 = vector.broadcast %cst_36 : f32 to vector<2x32xf32>
    %164 = arith.select %162, %163, %156 : vector<2x32xi1>, vector<2x32xf32>
    %c3 = arith.constant 3 : index
    %c0_37 = arith.constant 0 : index
    %c0_38 = arith.constant 0 : index
    %165 = vector.load %arg8[%c3, %c0_37, %c0_38] : memref<8x2x32xf32, #tpu.memory_space<vmem>>, vector<1x2x32xf32>
    %166 = vector.shape_cast %165 : vector<1x2x32xf32> to vector<2x32xf32>
    %167 = vector.shape_cast %164 : vector<2x32xf32> to vector<1x2x32xf32>
    tpu.vector_store %arg8[%c3, %c0_37, %c0_38], %167 {strides = array<i32>} : memref<8x2x32xf32, #tpu.memory_space<vmem>>, vector<1x2x32xf32>,
    %c4 = arith.constant 4 : index
    %c0_39 = arith.constant 0 : index
    %c0_40 = arith.constant 0 : index
    %168 = vector.load %arg9[%c4, %c0_39, %c0_40] : memref<8x2x32xf32, #tpu.memory_space<vmem>>, vector<1x2x32xf32>
    %169 = vector.shape_cast %168 : vector<1x2x32xf32> to vector<2x32xf32>
    %170 = vector.shape_cast %156 : vector<2x32xf32> to vector<1x2x32xf32>
    tpu.vector_store %arg9[%c4, %c0_39, %c0_40], %170 {strides = array<i32>} : memref<8x2x32xf32, #tpu.memory_space<vmem>>, vector<1x2x32xf32>,
    %171 = vector.extract_strided_slice %8 {offsets = [0, 4, 0], sizes = [2, 1, 128], strides = [1, 1, 1]} : vector<2x8x128xf32> to vector<2x1x128xf32>
    %172 = vector.shape_cast %171 : vector<2x1x128xf32> to vector<2x128xf32>
    %cst_41 = arith.constant dense<0.000000e+00> : vector<2x128xf32>
    %173 = tpu.matmul %156, %9, %cst_41 {dimension_numbers = #tpu.dot_dimension_numbers<[1], [0], [0], [1], [0, 0, 1, 1], [], []>} : vector<2x32xf32>, vector<32x128xf32>, vector<2x128xf32> -> vector<2x128xf32>
    %174 = arith.addf %172, %173 : vector<2x128xf32>
    %175 = arith.negf %174 : vector<2x128xf32>
    %176 = math.exp %175 : vector<2x128xf32>
    %cst_42 = arith.constant 1.000000e+00 : f32
    %177 = vector.broadcast %cst_42 : f32 to vector<2x128xf32>
    %178 = arith.addf %177, %176 : vector<2x128xf32>
    %179 = arith.divf %177, %178 : vector<2x128xf32>
    %180 = math.tanh %174 : vector<2x128xf32>
    %181 = vector.extract_strided_slice %179 {offsets = [0, 0], sizes = [2, 32], strides = [1, 1]} : vector<2x128xf32> to vector<2x32xf32>
    %182 = vector.extract_strided_slice %179 {offsets = [0, 32], sizes = [2, 32], strides = [1, 1]} : vector<2x128xf32> to vector<2x32xf32>
    %183 = vector.extract_strided_slice %180 {offsets = [0, 64], sizes = [2, 32], strides = [1, 1]} : vector<2x128xf32> to vector<2x32xf32>
    %184 = vector.extract_strided_slice %179 {offsets = [0, 96], sizes = [2, 32], strides = [1, 1]} : vector<2x128xf32> to vector<2x32xf32>
    %185 = arith.mulf %182, %157 : vector<2x32xf32>
    %186 = arith.mulf %181, %183 : vector<2x32xf32>
    %187 = arith.addf %185, %186 : vector<2x32xf32>
    %188 = math.tanh %187 : vector<2x32xf32>
    %189 = arith.mulf %184, %188 : vector<2x32xf32>
    %c3_i32_43 = arith.constant 3 : i32
    %190 = vector.broadcast %c3_i32_43 : i32 to vector<2x1xi32>
    %191 = arith.cmpi sgt, %0, %190 : vector<2x1xi32>
    %192 = vector.broadcast %12 : vector<1x32xi1> to vector<2x32xi1>
    %193 = vector.broadcast %191 : vector<2x1xi1> to vector<2x32xi1>
    %194 = arith.ori %192, %193 : vector<2x32xi1>
    %195 = arith.select %194, %189, %156 : vector<2x32xi1>, vector<2x32xf32>
    %196 = arith.select %194, %187, %157 : vector<2x32xi1>, vector<2x32xf32>
    %c4_i32_44 = arith.constant 4 : i32
    %197 = vector.broadcast %c4_i32_44 : i32 to vector<2x1xi32>
    %198 = arith.cmpi sle, %0, %197 : vector<2x1xi32>
    %199 = vector.broadcast %12 : vector<1x32xi1> to vector<2x32xi1>
    %200 = vector.broadcast %198 : vector<2x1xi1> to vector<2x32xi1>
    %201 = arith.andi %199, %200 : vector<2x32xi1>
    %cst_45 = arith.constant 0.000000e+00 : f32
    %202 = vector.broadcast %cst_45 : f32 to vector<2x32xf32>
    %203 = arith.select %201, %202, %195 : vector<2x32xi1>, vector<2x32xf32>
    %c4_46 = arith.constant 4 : index
    %c0_47 = arith.constant 0 : index
    %c0_48 = arith.constant 0 : index
    %204 = vector.load %arg8[%c4_46, %c0_47, %c0_48] : memref<8x2x32xf32, #tpu.memory_space<vmem>>, vector<1x2x32xf32>
    %205 = vector.shape_cast %204 : vector<1x2x32xf32> to vector<2x32xf32>
    %206 = vector.shape_cast %203 : vector<2x32xf32> to vector<1x2x32xf32>
    tpu.vector_store %arg8[%c4_46, %c0_47, %c0_48], %206 {strides = array<i32>} : memref<8x2x32xf32, #tpu.memory_space<vmem>>, vector<1x2x32xf32>,
    %c3_49 = arith.constant 3 : index
    %c0_50 = arith.constant 0 : index
    %c0_51 = arith.constant 0 : index
    %207 = vector.load %arg9[%c3_49, %c0_50, %c0_51] : memref<8x2x32xf32, #tpu.memory_space<vmem>>, vector<1x2x32xf32>
    %208 = vector.shape_cast %207 : vector<1x2x32xf32> to vector<2x32xf32>
    %209 = vector.shape_cast %195 : vector<2x32xf32> to vector<1x2x32xf32>
    tpu.vector_store %arg9[%c3_49, %c0_50, %c0_51], %209 {strides = array<i32>} : memref<8x2x32xf32, #tpu.memory_space<vmem>>, vector<1x2x32xf32>,
    %210 = vector.extract_strided_slice %8 {offsets = [0, 5, 0], sizes = [2, 1, 128], strides = [1, 1, 1]} : vector<2x8x128xf32> to vector<2x1x128xf32>
    %211 = vector.shape_cast %210 : vector<2x1x128xf32> to vector<2x128xf32>
    %cst_52 = arith.constant dense<0.000000e+00> : vector<2x128xf32>
    %212 = tpu.matmul %195, %9, %cst_52 {dimension_numbers = #tpu.dot_dimension_numbers<[1], [0], [0], [1], [0, 0, 1, 1], [], []>} : vector<2x32xf32>, vector<32x128xf32>, vector<2x128xf32> -> vector<2x128xf32>
    %213 = arith.addf %211, %212 : vector<2x128xf32>
    %214 = arith.negf %213 : vector<2x128xf32>
    %215 = math.exp %214 : vector<2x128xf32>
    %cst_53 = arith.constant 1.000000e+00 : f32
    %216 = vector.broadcast %cst_53 : f32 to vector<2x128xf32>
    %217 = arith.addf %216, %215 : vector<2x128xf32>
    %218 = arith.divf %216, %217 : vector<2x128xf32>
    %219 = math.tanh %213 : vector<2x128xf32>
    %220 = vector.extract_strided_slice %218 {offsets = [0, 0], sizes = [2, 32], strides = [1, 1]} : vector<2x128xf32> to vector<2x32xf32>
    %221 = vector.extract_strided_slice %218 {offsets = [0, 32], sizes = [2, 32], strides = [1, 1]} : vector<2x128xf32> to vector<2x32xf32>
    %222 = vector.extract_strided_slice %219 {offsets = [0, 64], sizes = [2, 32], strides = [1, 1]} : vector<2x128xf32> to vector<2x32xf32>
    %223 = vector.extract_strided_slice %218 {offsets = [0, 96], sizes = [2, 32], strides = [1, 1]} : vector<2x128xf32> to vector<2x32xf32>
    %224 = arith.mulf %221, %196 : vector<2x32xf32>
    %225 = arith.mulf %220, %222 : vector<2x32xf32>
    %226 = arith.addf %224, %225 : vector<2x32xf32>
    %227 = math.tanh %226 : vector<2x32xf32>
    %228 = arith.mulf %223, %227 : vector<2x32xf32>
    %c2_i32_54 = arith.constant 2 : i32
    %229 = vector.broadcast %c2_i32_54 : i32 to vector<2x1xi32>
    %230 = arith.cmpi sgt, %0, %229 : vector<2x1xi32>
    %231 = vector.broadcast %12 : vector<1x32xi1> to vector<2x32xi1>
    %232 = vector.broadcast %230 : vector<2x1xi1> to vector<2x32xi1>
    %233 = arith.ori %231, %232 : vector<2x32xi1>
    %234 = arith.select %233, %228, %195 : vector<2x32xi1>, vector<2x32xf32>
    %235 = arith.select %233, %226, %196 : vector<2x32xi1>, vector<2x32xf32>
    %c5_i32_55 = arith.constant 5 : i32
    %236 = vector.broadcast %c5_i32_55 : i32 to vector<2x1xi32>
    %237 = arith.cmpi sle, %0, %236 : vector<2x1xi32>
    %238 = vector.broadcast %12 : vector<1x32xi1> to vector<2x32xi1>
    %239 = vector.broadcast %237 : vector<2x1xi1> to vector<2x32xi1>
    %240 = arith.andi %238, %239 : vector<2x32xi1>
    %cst_56 = arith.constant 0.000000e+00 : f32
    %241 = vector.broadcast %cst_56 : f32 to vector<2x32xf32>
    %242 = arith.select %240, %241, %234 : vector<2x32xi1>, vector<2x32xf32>
    %c5_57 = arith.constant 5 : index
    %c0_58 = arith.constant 0 : index
    %c0_59 = arith.constant 0 : index
    %243 = vector.load %arg8[%c5_57, %c0_58, %c0_59] : memref<8x2x32xf32, #tpu.memory_space<vmem>>, vector<1x2x32xf32>
    %244 = vector.shape_cast %243 : vector<1x2x32xf32> to vector<2x32xf32>
    %245 = vector.shape_cast %242 : vector<2x32xf32> to vector<1x2x32xf32>
    tpu.vector_store %arg8[%c5_57, %c0_58, %c0_59], %245 {strides = array<i32>} : memref<8x2x32xf32, #tpu.memory_space<vmem>>, vector<1x2x32xf32>,
    %c2_60 = arith.constant 2 : index
    %c0_61 = arith.constant 0 : index
    %c0_62 = arith.constant 0 : index
    %246 = vector.load %arg9[%c2_60, %c0_61, %c0_62] : memref<8x2x32xf32, #tpu.memory_space<vmem>>, vector<1x2x32xf32>
    %247 = vector.shape_cast %246 : vector<1x2x32xf32> to vector<2x32xf32>
    %248 = vector.shape_cast %234 : vector<2x32xf32> to vector<1x2x32xf32>
    tpu.vector_store %arg9[%c2_60, %c0_61, %c0_62], %248 {strides = array<i32>} : memref<8x2x32xf32, #tpu.memory_space<vmem>>, vector<1x2x32xf32>,
    %249 = vector.extract_strided_slice %8 {offsets = [0, 6, 0], sizes = [2, 1, 128], strides = [1, 1, 1]} : vector<2x8x128xf32> to vector<2x1x128xf32>
    %250 = vector.shape_cast %249 : vector<2x1x128xf32> to vector<2x128xf32>
    %cst_63 = arith.constant dense<0.000000e+00> : vector<2x128xf32>
    %251 = tpu.matmul %234, %9, %cst_63 {dimension_numbers = #tpu.dot_dimension_numbers<[1], [0], [0], [1], [0, 0, 1, 1], [], []>} : vector<2x32xf32>, vector<32x128xf32>, vector<2x128xf32> -> vector<2x128xf32>
    %252 = arith.addf %250, %251 : vector<2x128xf32>
    %253 = arith.negf %252 : vector<2x128xf32>
    %254 = math.exp %253 : vector<2x128xf32>
    %cst_64 = arith.constant 1.000000e+00 : f32
    %255 = vector.broadcast %cst_64 : f32 to vector<2x128xf32>
    %256 = arith.addf %255, %254 : vector<2x128xf32>
    %257 = arith.divf %255, %256 : vector<2x128xf32>
    %258 = math.tanh %252 : vector<2x128xf32>
    %259 = vector.extract_strided_slice %257 {offsets = [0, 0], sizes = [2, 32], strides = [1, 1]} : vector<2x128xf32> to vector<2x32xf32>
    %260 = vector.extract_strided_slice %257 {offsets = [0, 32], sizes = [2, 32], strides = [1, 1]} : vector<2x128xf32> to vector<2x32xf32>
    %261 = vector.extract_strided_slice %258 {offsets = [0, 64], sizes = [2, 32], strides = [1, 1]} : vector<2x128xf32> to vector<2x32xf32>
    %262 = vector.extract_strided_slice %257 {offsets = [0, 96], sizes = [2, 32], strides = [1, 1]} : vector<2x128xf32> to vector<2x32xf32>
    %263 = arith.mulf %260, %235 : vector<2x32xf32>
    %264 = arith.mulf %259, %261 : vector<2x32xf32>
    %265 = arith.addf %263, %264 : vector<2x32xf32>
    %266 = math.tanh %265 : vector<2x32xf32>
    %267 = arith.mulf %262, %266 : vector<2x32xf32>
    %c1_i32_65 = arith.constant 1 : i32
    %268 = vector.broadcast %c1_i32_65 : i32 to vector<2x1xi32>
    %269 = arith.cmpi sgt, %0, %268 : vector<2x1xi32>
    %270 = vector.broadcast %12 : vector<1x32xi1> to vector<2x32xi1>
    %271 = vector.broadcast %269 : vector<2x1xi1> to vector<2x32xi1>
    %272 = arith.ori %270, %271 : vector<2x32xi1>
    %273 = arith.select %272, %267, %234 : vector<2x32xi1>, vector<2x32xf32>
    %274 = arith.select %272, %265, %235 : vector<2x32xi1>, vector<2x32xf32>
    %c6_i32_66 = arith.constant 6 : i32
    %275 = vector.broadcast %c6_i32_66 : i32 to vector<2x1xi32>
    %276 = arith.cmpi sle, %0, %275 : vector<2x1xi32>
    %277 = vector.broadcast %12 : vector<1x32xi1> to vector<2x32xi1>
    %278 = vector.broadcast %276 : vector<2x1xi1> to vector<2x32xi1>
    %279 = arith.andi %277, %278 : vector<2x32xi1>
    %cst_67 = arith.constant 0.000000e+00 : f32
    %280 = vector.broadcast %cst_67 : f32 to vector<2x32xf32>
    %281 = arith.select %279, %280, %273 : vector<2x32xi1>, vector<2x32xf32>
    %c6_68 = arith.constant 6 : index
    %c0_69 = arith.constant 0 : index
    %c0_70 = arith.constant 0 : index
    %282 = vector.load %arg8[%c6_68, %c0_69, %c0_70] : memref<8x2x32xf32, #tpu.memory_space<vmem>>, vector<1x2x32xf32>
    %283 = vector.shape_cast %282 : vector<1x2x32xf32> to vector<2x32xf32>
    %284 = vector.shape_cast %281 : vector<2x32xf32> to vector<1x2x32xf32>
    tpu.vector_store %arg8[%c6_68, %c0_69, %c0_70], %284 {strides = array<i32>} : memref<8x2x32xf32, #tpu.memory_space<vmem>>, vector<1x2x32xf32>,
    %c1_71 = arith.constant 1 : index
    %c0_72 = arith.constant 0 : index
    %c0_73 = arith.constant 0 : index
    %285 = vector.load %arg9[%c1_71, %c0_72, %c0_73] : memref<8x2x32xf32, #tpu.memory_space<vmem>>, vector<1x2x32xf32>
    %286 = vector.shape_cast %285 : vector<1x2x32xf32> to vector<2x32xf32>
    %287 = vector.shape_cast %273 : vector<2x32xf32> to vector<1x2x32xf32>
    tpu.vector_store %arg9[%c1_71, %c0_72, %c0_73], %287 {strides = array<i32>} : memref<8x2x32xf32, #tpu.memory_space<vmem>>, vector<1x2x32xf32>,
    %288 = vector.extract_strided_slice %8 {offsets = [0, 7, 0], sizes = [2, 1, 128], strides = [1, 1, 1]} : vector<2x8x128xf32> to vector<2x1x128xf32>
    %289 = vector.shape_cast %288 : vector<2x1x128xf32> to vector<2x128xf32>
    %cst_74 = arith.constant dense<0.000000e+00> : vector<2x128xf32>
    %290 = tpu.matmul %273, %9, %cst_74 {dimension_numbers = #tpu.dot_dimension_numbers<[1], [0], [0], [1], [0, 0, 1, 1], [], []>} : vector<2x32xf32>, vector<32x128xf32>, vector<2x128xf32> -> vector<2x128xf32>
    %291 = arith.addf %289, %290 : vector<2x128xf32>
    %292 = arith.negf %291 : vector<2x128xf32>
    %293 = math.exp %292 : vector<2x128xf32>
    %cst_75 = arith.constant 1.000000e+00 : f32
    %294 = vector.broadcast %cst_75 : f32 to vector<2x128xf32>
    %295 = arith.addf %294, %293 : vector<2x128xf32>
    %296 = arith.divf %294, %295 : vector<2x128xf32>
    %297 = math.tanh %291 : vector<2x128xf32>
    %298 = vector.extract_strided_slice %296 {offsets = [0, 0], sizes = [2, 32], strides = [1, 1]} : vector<2x128xf32> to vector<2x32xf32>
    %299 = vector.extract_strided_slice %296 {offsets = [0, 32], sizes = [2, 32], strides = [1, 1]} : vector<2x128xf32> to vector<2x32xf32>
    %300 = vector.extract_strided_slice %297 {offsets = [0, 64], sizes = [2, 32], strides = [1, 1]} : vector<2x128xf32> to vector<2x32xf32>
    %301 = vector.extract_strided_slice %296 {offsets = [0, 96], sizes = [2, 32], strides = [1, 1]} : vector<2x128xf32> to vector<2x32xf32>
    %302 = arith.mulf %299, %274 : vector<2x32xf32>
    %303 = arith.mulf %298, %300 : vector<2x32xf32>
    %304 = arith.addf %302, %303 : vector<2x32xf32>
    %305 = math.tanh %304 : vector<2x32xf32>
    %306 = arith.mulf %301, %305 : vector<2x32xf32>
    %c0_i32_76 = arith.constant 0 : i32
    %307 = vector.broadcast %c0_i32_76 : i32 to vector<2x1xi32>
    %308 = arith.cmpi sgt, %0, %307 : vector<2x1xi32>
    %309 = vector.broadcast %12 : vector<1x32xi1> to vector<2x32xi1>
    %310 = vector.broadcast %308 : vector<2x1xi1> to vector<2x32xi1>
    %311 = arith.ori %309, %310 : vector<2x32xi1>
    %312 = arith.select %311, %306, %273 : vector<2x32xi1>, vector<2x32xf32>
    %c7_i32_77 = arith.constant 7 : i32
    %313 = vector.broadcast %c7_i32_77 : i32 to vector<2x1xi32>
    %314 = arith.cmpi sle, %0, %313 : vector<2x1xi32>
    %315 = vector.broadcast %12 : vector<1x32xi1> to vector<2x32xi1>
    %316 = vector.broadcast %314 : vector<2x1xi1> to vector<2x32xi1>
    %317 = arith.andi %315, %316 : vector<2x32xi1>
    %cst_78 = arith.constant 0.000000e+00 : f32
    %318 = vector.broadcast %cst_78 : f32 to vector<2x32xf32>
    %319 = arith.select %317, %318, %312 : vector<2x32xi1>, vector<2x32xf32>
    %c7_79 = arith.constant 7 : index
    %c0_80 = arith.constant 0 : index
    %c0_81 = arith.constant 0 : index
    %320 = vector.load %arg8[%c7_79, %c0_80, %c0_81] : memref<8x2x32xf32, #tpu.memory_space<vmem>>, vector<1x2x32xf32>
    %321 = vector.shape_cast %320 : vector<1x2x32xf32> to vector<2x32xf32>
    %322 = vector.shape_cast %319 : vector<2x32xf32> to vector<1x2x32xf32>
    tpu.vector_store %arg8[%c7_79, %c0_80, %c0_81], %322 {strides = array<i32>} : memref<8x2x32xf32, #tpu.memory_space<vmem>>, vector<1x2x32xf32>,
    %c0_82 = arith.constant 0 : index
    %c0_83 = arith.constant 0 : index
    %c0_84 = arith.constant 0 : index
    %323 = vector.load %arg9[%c0_82, %c0_83, %c0_84] : memref<8x2x32xf32, #tpu.memory_space<vmem>>, vector<1x2x32xf32>
    %324 = vector.shape_cast %323 : vector<1x2x32xf32> to vector<2x32xf32>
    %325 = vector.shape_cast %312 : vector<2x32xf32> to vector<1x2x32xf32>
    tpu.vector_store %arg9[%c0_82, %c0_83, %c0_84], %325 {strides = array<i32>} : memref<8x2x32xf32, #tpu.memory_space<vmem>>, vector<1x2x32xf32>,
    %c0_85 = arith.constant 0 : index
    %c0_86 = arith.constant 0 : index
    %c0_87 = arith.constant 0 : index
    %326 = vector.load %arg8[%c0_85, %c0_86, %c0_87] : memref<8x2x32xf32, #tpu.memory_space<vmem>>, vector<8x2x32xf32>
    %327 = vector.extract_strided_slice %326 {offsets = [0, 0, 0], sizes = [8, 2, 16], strides = [1, 1, 1]} : vector<8x2x32xf32> to vector<8x2x16xf32>
    %328 = vector.shape_cast %327 : vector<8x2x16xf32> to vector<16x16xf32>
    %c0_88 = arith.constant 0 : index
    %c0_89 = arith.constant 0 : index
    %c0_90 = arith.constant 0 : index
    %329 = vector.load %arg9[%c0_88, %c0_89, %c0_90] : memref<8x2x32xf32, #tpu.memory_space<vmem>>, vector<8x2x32xf32>
    %330 = vector.extract_strided_slice %329 {offsets = [0, 0, 16], sizes = [8, 2, 16], strides = [1, 1, 1]} : vector<8x2x32xf32> to vector<8x2x16xf32>
    %331 = vector.shape_cast %330 : vector<8x2x16xf32> to vector<16x16xf32>
    %c0_91 = arith.constant 0 : index
    %c0_92 = arith.constant 0 : index
    %332 = vector.load %arg5[%c0_91, %c0_92] : memref<32x128xf32, #tpu.memory_space<vmem>>, vector<32x128xf32>
    %333 = vector.extract_strided_slice %332 {offsets = [0, 0], sizes = [16, 128], strides = [1, 1]} : vector<32x128xf32> to vector<16x128xf32>
    %cst_93 = arith.constant dense<0.000000e+00> : vector<16x128xf32>
    %334 = tpu.matmul %328, %333, %cst_93 {dimension_numbers = #tpu.dot_dimension_numbers<[1], [0], [0], [1], [0, 0, 1, 1], [], []>} : vector<16x16xf32>, vector<16x128xf32>, vector<16x128xf32> -> vector<16x128xf32>
    %335 = vector.extract_strided_slice %332 {offsets = [16, 0], sizes = [16, 128], strides = [1, 1]} : vector<32x128xf32> to vector<16x128xf32>
    %cst_94 = arith.constant dense<0.000000e+00> : vector<16x128xf32>
    %336 = tpu.matmul %331, %335, %cst_94 {dimension_numbers = #tpu.dot_dimension_numbers<[1], [0], [0], [1], [0, 0, 1, 1], [], []>} : vector<16x16xf32>, vector<16x128xf32>, vector<16x128xf32> -> vector<16x128xf32>
    %337 = arith.addf %334, %336 : vector<16x128xf32>
    %c0_95 = arith.constant 0 : index
    %c0_96 = arith.constant 0 : index
    %338 = vector.load %arg6[%c0_95, %c0_96] : memref<1x128xf32, #tpu.memory_space<vmem>>, vector<1x128xf32>
    %339 = vector.broadcast %338 : vector<1x128xf32> to vector<16x128xf32>
    %340 = arith.addf %337, %339 : vector<16x128xf32>
    %c0_97 = arith.constant 0 : index
    %c0_98 = arith.constant 0 : index
    %341 = vector.load %arg7[%c0_97, %c0_98] : memref<16x128xf32, #tpu.memory_space<vmem>>, vector<16x128xf32>
    tpu.vector_store %arg7[%c0_97, %c0_98], %340 {strides = array<i32>} : memref<16x128xf32, #tpu.memory_space<vmem>>, vector<16x128xf32>,
    return
  }
}

</mosaic_0001>

<llo_original>
// kernel: tpu_custom_call.1
$region0: #{tpu_custom_call.1}
  #allocation0 [shape = 'u32[]', space=smem, size = 0x4, offset = 0x4, fixed_abs, tag = 'smem constant byte address 0x4 - core index']
  #allocation1 [shape = 'u32[144,128]{1,0:T(1,128)}', space=vmem, size = 0x12000, scoped, tag = 'internal scratch']
  #allocation2 [shape = 'f32[8,2,32]{2,1,0:T(2,128)}', space=vmem, size = 0x2000, scoped, tag = 'scratch operand']
  #allocation3 [shape = 'f32[8,2,32]{2,1,0:T(2,128)}', space=vmem, size = 0x2000, scoped, tag = 'scratch operand']
  %s0 = inlined_call_operand.vmem [shape: s32[2,1], index: 0, kind: input, shape index: {}]
  %s1 = inlined_call_operand.hbm [shape: f32[2,8,128], index: 1, kind: input, shape index: {}]
  %s2 = inlined_call_operand.hbm [shape: f32[128,128], index: 2, kind: input, shape index: {}]
  %s3 = inlined_call_operand.vmem [shape: f32[1,128], index: 3, kind: input, shape index: {}]
  %s4 = inlined_call_operand.hbm [shape: f32[32,128], index: 4, kind: input, shape index: {}]
  %s5 = inlined_call_operand.hbm [shape: f32[32,128], index: 5, kind: input, shape index: {}]
  %s6 = inlined_call_operand.vmem [shape: f32[1,128], index: 6, kind: input, shape index: {}]
  %s7 = inlined_call_operand.hbm [shape: f32[16,128], index: 7, kind: output, shape index: {}]
  %s8 = sld [smem:[#allocation0]]
  $region54: #{tpu_custom_call.1} parent=0
    _
  %s10 = ssub.s32 1, %s8
  %s11 = scalar_select 0, %s10, %s8
  $region1: #{tpu_custom_call.1} parent=0
    #allocation4 [shape = 'u8[8192]{0}', space=vmem, size = 0x2000, scoped, tag = 'input window, operand 1, single buffered']
    #allocation5 [shape = 's32[1]{0}', space=sflag, size = 0x4, scoped, tag = 'scoped memory for tpu_custom_call.1']
    #allocation6 [shape = 's32[1]{0}', space=sflag, size = 0x4, scoped, tag = 'scoped memory for tpu_custom_call.1']
    #allocation7 [shape = 'u8[65536]{0}', space=vmem, size = 0x10000, scoped, tag = 'input window, operand 2, single buffered']
    #allocation8 [shape = 's32[1]{0}', space=sflag, size = 0x4, scoped, tag = 'scoped memory for tpu_custom_call.1']
    #allocation9 [shape = 'u8[16384]{0}', space=vmem, size = 0x4000, scoped, tag = 'input window, operand 4, single buffered']
    #allocation10 [shape = 'u8[16384]{0}', space=vmem, size = 0x4000, scoped, tag = 'input window, operand 5, single buffered']
    #allocation11 [shape = 's32[1]{0}', space=sflag, size = 0x4, scoped, tag = 'scoped memory for tpu_custom_call.1']
    #allocation12 [shape = 'u8[8192]{0}', space=vmem, size = 0x2000, scoped, tag = 'output window, operand 0, single buffered']
    %12 = vsyncpa [#allocation5], 0
    %13 = vsyncpa [#allocation8], 0
    %14 = vsyncpa [#allocation11], 0
    %15 = vsyncpa [#allocation6], 0
    // Predicated region
    $region2: #{tpu_custom_call.1} parent=1 // pred_check
      _
    $region3: #{tpu_custom_call.1} parent=1 // pred_check_branch
      %17 = sbr.rel (0) target = $region5
    $region4: #{tpu_custom_call.1} parent=1 // pred_region
      _
    $region5: #{tpu_custom_call.1} parent=1 // pred_fallthru
      _
    // Predicated region
    $region6: #{tpu_custom_call.1} parent=1 // pred_check
      _
    $region7: #{tpu_custom_call.1} parent=1 // pred_check_branch
      %19 = sbr.rel (0) target = $region9
    $region8: #{tpu_custom_call.1} parent=1 // pred_region
      %s21 = ssub.s32 256, 256
      %22 = vsyncadd [#allocation5], %s21
      %s23 = sshll.u32 [#allocation4], 4
      %s24 = int_to_ptr.vmem [resolvable:$true] %s23
      %29 = dma.hbm_to_vmem [thread:$0]  %s1, 256, %s24, [#allocation5], 128, 128, 8
    $region9: #{tpu_custom_call.1} parent=1 // pred_fallthru
      _
    // Predicated region
    $region10: #{tpu_custom_call.1} parent=1 // pred_check
      _
    $region11: #{tpu_custom_call.1} parent=1 // pred_check_branch
      %31 = sbr.rel (0) target = $region13
    $region12: #{tpu_custom_call.1} parent=1 // pred_region
      %s33 = ssub.s32 2048, 2048
      %34 = vsyncadd [#allocation8], %s33
      %s35 = sshll.u32 [#allocation7], 4
      %s36 = int_to_ptr.vmem [resolvable:$true] %s35
      %41 = dma.hbm_to_vmem [thread:$0]  %s2, 2048, %s36, [#allocation8], 128, 128, 8
    $region13: #{tpu_custom_call.1} parent=1 // pred_fallthru
      _
    // Predicated region
    $region14: #{tpu_custom_call.1} parent=1 // pred_check
      _
    $region15: #{tpu_custom_call.1} parent=1 // pred_check_branch
      %43 = sbr.rel (0) target = $region17
    $region16: #{tpu_custom_call.1} parent=1 // pred_region
      _
    $region17: #{tpu_custom_call.1} parent=1 // pred_fallthru
      _
    // Predicated region
    $region18: #{tpu_custom_call.1} parent=1 // pred_check
      _
    $region19: #{tpu_custom_call.1} parent=1 // pred_check_branch
      %45 = sbr.rel (0) target = $region21
    $region20: #{tpu_custom_call.1} parent=1 // pred_region
      %s47 = ssub.s32 512, 512
      %48 = vsyncadd [#allocation8], %s47
      %s49 = sshll.u32 [#allocation9], 4
      %s50 = int_to_ptr.vmem [resolvable:$true] %s49
      %55 = dma.hbm_to_vmem [thread:$0]  %s4, 512, %s50, [#allocation8], 128, 128, 8
    $region21: #{tpu_custom_call.1} parent=1 // pred_fallthru
      _
    // Predicated region
    $region22: #{tpu_custom_call.1} parent=1 // pred_check
      _
    $region23: #{tpu_custom_call.1} parent=1 // pred_check_branch
      %57 = sbr.rel (0) target = $region25
    $region24: #{tpu_custom_call.1} parent=1 // pred_region
      %s59 = ssub.s32 512, 512
      %60 = vsyncadd [#allocation11], %s59
      %s61 = sshll.u32 [#allocation10], 4
      %s62 = int_to_ptr.vmem [resolvable:$true] %s61
      %67 = dma.hbm_to_vmem [thread:$0]  %s5, 512, %s62, [#allocation11], 128, 128, 8
    $region25: #{tpu_custom_call.1} parent=1 // pred_fallthru
      _
    // Predicated region
    $region26: #{tpu_custom_call.1} parent=1 // pred_check
      _
    $region27: #{tpu_custom_call.1} parent=1 // pred_check_branch
      %69 = sbr.rel (0) target = $region29
    $region28: #{tpu_custom_call.1} parent=1 // pred_region
      _
    $region29: #{tpu_custom_call.1} parent=1 // pred_fallthru
      _
    // Predicated region
    $region30: #{tpu_custom_call.1} parent=1 // pred_check
      _
    $region31: #{tpu_custom_call.1} parent=1 // pred_check_branch
      %71 = sbr.rel (0) target = $region33
    $region32: #{tpu_custom_call.1} parent=1 // pred_region
      %72 = dma.done [#allocation5], 256
    $region33: #{tpu_custom_call.1} parent=1 // pred_fallthru
      _
    // Predicated region
    $region34: #{tpu_custom_call.1} parent=1 // pred_check
      _
    $region35: #{tpu_custom_call.1} parent=1 // pred_check_branch
      %74 = sbr.rel (0) target = $region37
    $region36: #{tpu_custom_call.1} parent=1 // pred_region
      %75 = dma.done [#allocation8], 2048
    $region37: #{tpu_custom_call.1} parent=1 // pred_fallthru
      _
    // Predicated region
    $region38: #{tpu_custom_call.1} parent=1 // pred_check
      _
    $region39: #{tpu_custom_call.1} parent=1 // pred_check_branch
      %77 = sbr.rel (0) target = $region41
    $region40: #{tpu_custom_call.1} parent=1 // pred_region
      %78 = dma.done [#allocation8], 512
    $region41: #{tpu_custom_call.1} parent=1 // pred_fallthru
      _
    // Predicated region
    $region42: #{tpu_custom_call.1} parent=1 // pred_check
      _
    $region43: #{tpu_custom_call.1} parent=1 // pred_check_branch
      %80 = sbr.rel (0) target = $region45
    $region44: #{tpu_custom_call.1} parent=1 // pred_region
      %81 = dma.done [#allocation11], 512
    $region45: #{tpu_custom_call.1} parent=1 // pred_fallthru
      _
    %v82 = vld [vmem:[%s0] sm:$0x3]
    %v83 = vld [vmem:[#allocation4] sm:$0xff]
    %v84 = vld [vmem:[#allocation4 + $0x8] sm:$0xff]
    %v85 = vld [vmem:[#allocation7] sm:$0xff]
    %v86 = vld [vmem:[#allocation7 + $0x8] sm:$0xff]
    %v87 = vld [vmem:[#allocation7 + $0x10] sm:$0xff]
    %v88 = vld [vmem:[#allocation7 + $0x18] sm:$0xff]
    %v89 = vld [vmem:[#allocation7 + $0x20] sm:$0xff]
    %v90 = vld [vmem:[#allocation7 + $0x28] sm:$0xff]
    %v91 = vld [vmem:[#allocation7 + $0x30] sm:$0xff]
    %v92 = vld [vmem:[#allocation7 + $0x38] sm:$0xff]
    %v93 = vld [vmem:[#allocation7 + $0x40] sm:$0xff]
    %v94 = vld [vmem:[#allocation7 + $0x48] sm:$0xff]
    %v95 = vld [vmem:[#allocation7 + $0x50] sm:$0xff]
    %v96 = vld [vmem:[#allocation7 + $0x58] sm:$0xff]
    %v97 = vld [vmem:[#allocation7 + $0x60] sm:$0xff]
    %v98 = vld [vmem:[#allocation7 + $0x68] sm:$0xff]
    %v99 = vld [vmem:[#allocation7 + $0x70] sm:$0xff]
    %v100 = vld [vmem:[#allocation7 + $0x78] sm:$0xff]
    %v101 = vld [vmem:[%s3] sm:$0x1]
    %v103 = vlaneseq
    %v104 = vshrl.u32 %v103, 7
    %v105 = vsub.s32 0, %v104
    %v106 = vrot.slane %v101, %v105
    %108 = vmatprep.subr.mxu0 0.0
    %109 = vmatpush1.msra.mxu0 %v85
    %110 = vmatprep.subr.mxu0 0.0
    %111 = vmatpush1.msra.mxu0 %v86
    %112 = vmatprep.subr.mxu0 0.0
    %113 = vmatpush1.msra.mxu0 %v87
    %114 = vmatprep.subr.mxu0 0.0
    %115 = vmatpush1.msra.mxu0 %v88
    %116 = vmatprep.subr.mxu0 0.0
    %117 = vmatpush1.msra.mxu0 %v89
    %118 = vmatprep.subr.mxu0 0.0
    %119 = vmatpush1.msra.mxu0 %v90
    %120 = vmatprep.subr.mxu0 0.0
    %121 = vmatpush1.msra.mxu0 %v91
    %122 = vmatprep.subr.mxu0 0.0
    %123 = vmatpush1.msra.mxu0 %v92
    %124 = vmatprep.subr.mxu0 0.0
    %125 = vmatpush1.msra.mxu0 %v93
    %126 = vmatprep.subr.mxu0 0.0
    %127 = vmatpush1.msra.mxu0 %v94
    %128 = vmatprep.subr.mxu0 0.0
    %129 = vmatpush1.msra.mxu0 %v95
    %130 = vmatprep.subr.mxu0 0.0
    %131 = vmatpush1.msra.mxu0 %v96
    %132 = vmatprep.subr.mxu0 0.0
    %133 = vmatpush1.msra.mxu0 %v97
    %134 = vmatprep.subr.mxu0 0.0
    %135 = vmatpush1.msra.mxu0 %v98
    %136 = vmatprep.subr.mxu0 0.0
    %137 = vmatpush1.msra.mxu0 %v99
    %138 = vmatprep.subr.mxu0 0.0
    %139 = vmatpush1.msra.mxu0 %v100
    %140 = vmatprep.subr.mxu0 0.0
    %141 = vmatpush1.msra.mxu0 0.0
    %142 = vmatprep.subr.mxu0 0.0
    %143 = vmatpush1.msra.mxu0 0.0
    %144 = vmatprep.subr.mxu0 0.0
    %145 = vmatpush1.msra.mxu0 0.0
    %146 = vmatprep.subr.mxu0 0.0
    %147 = vmatpush1.msra.mxu0 0.0
    %148 = vmatprep.subr.mxu0 0.0
    %149 = vmatpush1.msra.mxu0 0.0
    %150 = vmatprep.subr.mxu0 0.0
    %151 = vmatpush1.msra.mxu0 0.0
    %152 = vmatprep.subr.mxu0 0.0
    %153 = vmatpush1.msra.mxu0 0.0
    %154 = vmatprep.subr.mxu0 0.0
    %155 = vmatpush1.msra.mxu0 0.0
    %156 = vmatprep.subr.mxu0 0.0
    %157 = vmatpush1.msra.mxu0 0.0
    %158 = vmatprep.subr.mxu0 0.0
    %159 = vmatpush1.msra.mxu0 0.0
    %160 = vmatprep.subr.mxu0 0.0
    %161 = vmatpush1.msra.mxu0 0.0
    %162 = vmatprep.subr.mxu0 0.0
    %163 = vmatpush1.msra.mxu0 0.0
    %164 = vmatprep.subr.mxu0 0.0
    %165 = vmatpush1.msra.mxu0 0.0
    %166 = vmatprep.subr.mxu0 0.0
    %167 = vmatpush1.msra.mxu0 0.0
    %168 = vmatprep.subr.mxu0 0.0
    %169 = vmatpush1.msra.mxu0 0.0
    %170 = vmatprep.subr.mxu0 0.0
    %171 = vmatpush1.msra.mxu0 0.0
    %172 = vmatprep.mubr.f32.mxu0 0.0
    %173 = vmatmul.mubr.f32.gmra.mrb[0].mxu0 %v83
    %v174 = vpop.f32.mrb[0].mxu0
    %v175 = vadd.f32 %v106, %v174
    %v176 = vpop.f32.mrb[0].mxu0
    %177 = vmatprep.mubr.f32.mxu0 0.0
    %178 = vmatmul.mubr.f32.gmra.mrb[0].mxu0 %v84
    %v179 = vpop.f32.mrb[0].mxu0
    %v180 = vadd.f32 %v106, %v179
    %v181 = vpop.f32.mrb[0].mxu0
    %182 = vdwg.mxu0
    %v183 = vld [vmem:[#allocation9] sm:$0xff]
    %v184 = vld [vmem:[#allocation9 + $0x8] sm:$0xff]
    %v185 = vld [vmem:[#allocation9 + $0x10] sm:$0xff]
    %v186 = vld [vmem:[#allocation9 + $0x18] sm:$0xff]
    %v187 = vlaneseq
    %v188 = vand.u32 %v187, 127
    %vm189 = vcmp.lt.s32.totalorder %v188, 16
    %vm190 = vcmask 261120
    %v192 = vsel %vm190, 0.0, 0
    %194 = vmatprep.subr.mxu0 0.0
    %195 = vmatpush1.msra.mxu0 %v183
    %196 = vmatprep.subr.mxu0 0.0
    %197 = vmatpush1.msra.mxu0 %v184
    %198 = vmatprep.subr.mxu0 0.0
    %199 = vmatpush1.msra.mxu0 %v185
    %200 = vmatprep.subr.mxu0 0.0
    %201 = vmatpush1.msra.mxu0 %v186
    %202 = vmatprep.subr.mxu0 0.0
    %203 = vmatpush1.msra.mxu0 0.0
    %204 = vmatprep.subr.mxu0 0.0
    %205 = vmatpush1.msra.mxu0 0.0
    %206 = vmatprep.subr.mxu0 0.0
    %207 = vmatpush1.msra.mxu0 0.0
    %208 = vmatprep.subr.mxu0 0.0
    %209 = vmatpush1.msra.mxu0 0.0
    %210 = vmatprep.subr.mxu0 0.0
    %211 = vmatpush1.msra.mxu0 0.0
    %212 = vmatprep.subr.mxu0 0.0
    %213 = vmatpush1.msra.mxu0 0.0
    %214 = vmatprep.subr.mxu0 0.0
    %215 = vmatpush1.msra.mxu0 0.0
    %216 = vmatprep.subr.mxu0 0.0
    %217 = vmatpush1.msra.mxu0 0.0
    %218 = vmatprep.subr.mxu0 0.0
    %219 = vmatpush1.msra.mxu0 0.0
    %220 = vmatprep.subr.mxu0 0.0
    %221 = vmatpush1.msra.mxu0 0.0
    %222 = vmatprep.subr.mxu0 0.0
    %223 = vmatpush1.msra.mxu0 0.0
    %224 = vmatprep.subr.mxu0 0.0
    %225 = vmatpush1.msra.mxu0 0.0
    %226 = vmatprep.subr.mxu0 0.0
    %227 = vmatpush1.msra.mxu0 0.0
    %228 = vmatprep.subr.mxu0 0.0
    %229 = vmatpush1.msra.mxu0 0.0
    %230 = vmatprep.subr.mxu0 0.0
    %231 = vmatpush1.msra.mxu0 0.0
    %232 = vmatprep.subr.mxu0 0.0
    %233 = vmatpush1.msra.mxu0 0.0
    %234 = vmatprep.subr.mxu0 0.0
    %235 = vmatpush1.msra.mxu0 0.0
    %236 = vmatprep.subr.mxu0 0.0
    %237 = vmatpush1.msra.mxu0 0.0
    %238 = vmatprep.subr.mxu0 0.0
    %239 = vmatpush1.msra.mxu0 0.0
    %240 = vmatprep.subr.mxu0 0.0
    %241 = vmatpush1.msra.mxu0 0.0
    %242 = vmatprep.subr.mxu0 0.0
    %243 = vmatpush1.msra.mxu0 0.0
    %244 = vmatprep.subr.mxu0 0.0
    %245 = vmatpush1.msra.mxu0 0.0
    %246 = vmatprep.subr.mxu0 0.0
    %247 = vmatpush1.msra.mxu0 0.0
    %248 = vmatprep.subr.mxu0 0.0
    %249 = vmatpush1.msra.mxu0 0.0
    %250 = vmatprep.subr.mxu0 0.0
    %251 = vmatpush1.msra.mxu0 0.0
    %252 = vmatprep.subr.mxu0 0.0
    %253 = vmatpush1.msra.mxu0 0.0
    %254 = vmatprep.subr.mxu0 0.0
    %255 = vmatpush1.msra.mxu0 0.0
    %256 = vmatprep.subr.mxu0 0.0
    %257 = vmatpush1.msra.mxu0 0.0
    %258 = vmatprep.mubr.f32.mxu0 0.0
    %259 = vmatmul.mubr.f32.gmra.mrb[0].mxu0 %v192
    %v260 = vpop.f32.mrb[0].mxu0
    %v261 = vadd.f32 0.0, %v260
    %v262 = vpop.f32.mrb[0].mxu0
    %263 = vdwg.mxu0
    %v265 = vrot.slane %v261, 1
    %v268 = vadd.f32 %v175, %v261
    %v269 = vadd.f32 %v180, %v265
    %v270 = vxor.u32 %v268, 2147483648
    %v271 = vxor.u32 %v269, 2147483648
    %v272 = vmul.f32 %v270, 1.442695
    %v273 = vpow.pop %v272
    %v274 = vmul.f32 %v271, 1.442695
    %v275 = vpow.pop %v274
    %v276 = vadd.f32 %v273, 1.0
    %v277 = vadd.f32 %v275, 1.0
    %v278 = vrcp.pop %v276
    %v279 = vmul.f32 1.0, %v278
    %v280 = vrcp.pop %v277
    %v281 = vmul.f32 1.0, %v280
    %v282 = vtanh.pop %v268
    %v283 = vtanh.pop %v269
    %v284 = vmul.f32 %v279, 0.0
    %v285 = vmul.f32 %v281, 0.0
    %288 = vrot.lane.b32.xlu0 %v282, 64
    %v289 = vpop.permute.xlu0 %288
    %290 = vrot.lane.b32.xlu0 %v283, 64
    %v291 = vpop.permute.xlu0 %290
    %v294 = vmul.f32 %v279, %v289
    %v295 = vmul.f32 %v281, %v291
    %298 = vrot.lane.b32.xlu0 %v294, 32
    %v299 = vpop.permute.xlu0 %298
    %300 = vrot.lane.b32.xlu0 %v295, 32
    %v301 = vpop.permute.xlu0 %300
    %v304 = vadd.f32 %v284, %v299
    %v305 = vadd.f32 %v285, %v301
    %v306 = vtanh.pop %v304
    %v307 = vtanh.pop %v305
    %310 = vrot.lane.b32.xlu0 %v306, 64
    %v311 = vpop.permute.xlu0 %310
    %312 = vrot.lane.b32.xlu0 %v307, 64
    %v313 = vpop.permute.xlu0 %312
    %v316 = vmul.f32 %v279, %v311
    %v317 = vmul.f32 %v281, %v313
    %vm318 = vcmp.gt.s32.totalorder %v82, 7
    %v319 = vsel %vm189, 1, 0
    %vm320 = vcmp.eq.s32.totalorder %v319, 1
    %v321 = vsel %vm318, 1, 0
    %322 = vset.pattern.permute.xlu0 0
    %323 = vperm.xlu0 %322, %v321
    %v324 = vpop.permute.xlu0 %323
    %vm325 = vcmp.eq.s32.totalorder %v324, 1
    %vm326 = vmor %vm320, %vm325
    %v329 = vrot.slane %v317, 7
    %vm330 = vcmask 1041409
    %v331 = vsel %vm330, %v329, %v316
    %332 = vrot.lane.b32.xlu0 %v331, 32
    %v333 = vpop.permute.xlu0 %332
    %v335 = vsel %vm326, %v333, 0.0
    %v338 = vrot.slane %v305, 7
    %v339 = vsel %vm330, %v338, %v304
    %340 = vrot.lane.b32.xlu0 %v339, 96
    %v341 = vpop.permute.xlu0 %340
    %v343 = vsel %vm326, %v341, 0.0
    %vm344 = vcmp.le.s32.totalorder %v82, 0
    %v345 = vsel %vm344, 1, 0
    %346 = vset.pattern.permute.xlu0 0
    %347 = vperm.xlu0 %346, %v345
    %v348 = vpop.permute.xlu0 %347
    %vm349 = vcmp.eq.s32.totalorder %v348, 1
    %vm350 = vmand %vm320, %vm349
    %v351 = vsel %vm350, 0.0, %v335
    %vm352 = vcmask 254976
    %353 = vst.msk [vmem:[#allocation2] sm:$0x3] %vm352, %v351
    %s354 = scalar_lea.vmem [#allocation3], 14
    %355 = vst.msk [vmem:[%s354] sm:$0x3] %vm352, %v335
    %v357 = vsel %vm190, %v335, 0
    %359 = vmatprep.subr.mxu0 0.0
    %360 = vmatpush1.msra.mxu0 %v183
    %361 = vmatprep.subr.mxu0 0.0
    %362 = vmatpush1.msra.mxu0 %v184
    %363 = vmatprep.subr.mxu0 0.0
    %364 = vmatpush1.msra.mxu0 %v185
    %365 = vmatprep.subr.mxu0 0.0
    %366 = vmatpush1.msra.mxu0 %v186
    %367 = vmatprep.subr.mxu0 0.0
    %368 = vmatpush1.msra.mxu0 0.0
    %369 = vmatprep.subr.mxu0 0.0
    %370 = vmatpush1.msra.mxu0 0.0
    %371 = vmatprep.subr.mxu0 0.0
    %372 = vmatpush1.msra.mxu0 0.0
    %373 = vmatprep.subr.mxu0 0.0
    %374 = vmatpush1.msra.mxu0 0.0
    %375 = vmatprep.subr.mxu0 0.0
    %376 = vmatpush1.msra.mxu0 0.0
    %377 = vmatprep.subr.mxu0 0.0
    %378 = vmatpush1.msra.mxu0 0.0
    %379 = vmatprep.subr.mxu0 0.0
    %380 = vmatpush1.msra.mxu0 0.0
    %381 = vmatprep.subr.mxu0 0.0
    %382 = vmatpush1.msra.mxu0 0.0
    %383 = vmatprep.subr.mxu0 0.0
    %384 = vmatpush1.msra.mxu0 0.0
    %385 = vmatprep.subr.mxu0 0.0
    %386 = vmatpush1.msra.mxu0 0.0
    %387 = vmatprep.subr.mxu0 0.0
    %388 = vmatpush1.msra.mxu0 0.0
    %389 = vmatprep.subr.mxu0 0.0
    %390 = vmatpush1.msra.mxu0 0.0
    %391 = vmatprep.subr.mxu0 0.0
    %392 = vmatpush1.msra.mxu0 0.0
    %393 = vmatprep.subr.mxu0 0.0
    %394 = vmatpush1.msra.mxu0 0.0
    %395 = vmatprep.subr.mxu0 0.0
    %396 = vmatpush1.msra.mxu0 0.0
    %397 = vmatprep.subr.mxu0 0.0
    %398 = vmatpush1.msra.mxu0 0.0
    %399 = vmatprep.subr.mxu0 0.0
    %400 = vmatpush1.msra.mxu0 0.0
    %401 = vmatprep.subr.mxu0 0.0
    %402 = vmatpush1.msra.mxu0 0.0
    %403 = vmatprep.subr.mxu0 0.0
    %404 = vmatpush1.msra.mxu0 0.0
    %405 = vmatprep.subr.mxu0 0.0
    %406 = vmatpush1.msra.mxu0 0.0
    %407 = vmatprep.subr.mxu0 0.0
    %408 = vmatpush1.msra.mxu0 0.0
    %409 = vmatprep.subr.mxu0 0.0
    %410 = vmatpush1.msra.mxu0 0.0
    %411 = vmatprep.subr.mxu0 0.0
    %412 = vmatpush1.msra.mxu0 0.0
    %413 = vmatprep.subr.mxu0 0.0
    %414 = vmatpush1.msra.mxu0 0.0
    %415 = vmatprep.subr.mxu0 0.0
    %416 = vmatpush1.msra.mxu0 0.0
    %417 = vmatprep.subr.mxu0 0.0
    %418 = vmatpush1.msra.mxu0 0.0
    %419 = vmatprep.subr.mxu0 0.0
    %420 = vmatpush1.msra.mxu0 0.0
    %421 = vmatprep.subr.mxu0 0.0
    %422 = vmatpush1.msra.mxu0 0.0
    %423 = vmatprep.mubr.f32.mxu0 0.0
    %424 = vmatmul.mubr.f32.gmra.mrb[0].mxu0 %v357
    %v425 = vpop.f32.mrb[0].mxu0
    %v426 = vadd.f32 0.0, %v425
    %v427 = vpop.f32.mrb[0].mxu0
    %428 = vdwg.mxu0
    %v430 = vrot.slane %v426, 7
    %v433 = vadd.f32 %v175, %v430
    %v434 = vadd.f32 %v180, %v426
    %v435 = vxor.u32 %v433, 2147483648
    %v436 = vxor.u32 %v434, 2147483648
    %v437 = vmul.f32 %v435, 1.442695
    %v438 = vpow.pop %v437
    %v439 = vmul.f32 %v436, 1.442695
    %v440 = vpow.pop %v439
    %v441 = vadd.f32 %v438, 1.0
    %v442 = vadd.f32 %v440, 1.0
    %v443 = vrcp.pop %v441
    %v444 = vmul.f32 1.0, %v443
    %v445 = vrcp.pop %v442
    %v446 = vmul.f32 1.0, %v445
    %v447 = vtanh.pop %v433
    %v448 = vtanh.pop %v434
    %v450 = vrot.slane %v343, 7
    %451 = vrot.lane.b32.xlu0 %v450, 32
    %v452 = vpop.permute.xlu0 %451
    %453 = vrot.lane.b32.xlu0 %v343, 32
    %v454 = vpop.permute.xlu0 %453
    %v457 = vmul.f32 %v444, %v452
    %v458 = vmul.f32 %v446, %v454
    %461 = vrot.lane.b32.xlu0 %v447, 64
    %v462 = vpop.permute.xlu0 %461
    %463 = vrot.lane.b32.xlu0 %v448, 64
    %v464 = vpop.permute.xlu0 %463
    %v467 = vmul.f32 %v444, %v462
    %v468 = vmul.f32 %v446, %v464
    %471 = vrot.lane.b32.xlu0 %v467, 32
    %v472 = vpop.permute.xlu0 %471
    %473 = vrot.lane.b32.xlu0 %v468, 32
    %v474 = vpop.permute.xlu0 %473
    %v477 = vadd.f32 %v457, %v472
    %v478 = vadd.f32 %v458, %v474
    %v479 = vtanh.pop %v477
    %v480 = vtanh.pop %v478
    %483 = vrot.lane.b32.xlu0 %v479, 64
    %v484 = vpop.permute.xlu0 %483
    %485 = vrot.lane.b32.xlu0 %v480, 64
    %v486 = vpop.permute.xlu0 %485
    %v489 = vmul.f32 %v444, %v484
    %v490 = vmul.f32 %v446, %v486
    %vm491 = vcmp.gt.s32.totalorder %v82, 6
    %v492 = vsel %vm491, 1, 0
    %493 = vset.pattern.permute.xlu0 0
    %494 = vperm.xlu0 %493, %v492
    %v495 = vpop.permute.xlu0 %494
    %vm496 = vcmp.eq.s32.totalorder %v495, 1
    %vm497 = vmor %vm320, %vm496
    %v500 = vrot.slane %v489, 1
    %v501 = vsel %vm330, %v490, %v500
    %502 = vrot.lane.b32.xlu0 %v501, 32
    %v503 = vpop.permute.xlu0 %502
    %v505 = vsel %vm497, %v503, %v335
    %v508 = vrot.slane %v477, 1
    %v509 = vsel %vm330, %v478, %v508
    %510 = vrot.lane.b32.xlu0 %v509, 96
    %v511 = vpop.permute.xlu0 %510
    %v513 = vsel %vm497, %v511, %v343
    %vm514 = vcmp.le.s32.totalorder %v82, 1
    %v515 = vsel %vm514, 1, 0
    %516 = vset.pattern.permute.xlu0 0
    %517 = vperm.xlu0 %516, %v515
    %v518 = vpop.permute.xlu0 %517
    %vm519 = vcmp.eq.s32.totalorder %v518, 1
    %vm520 = vmand %vm320, %vm519
    %v521 = vsel %vm520, 0.0, %v505
    %s522 = scalar_lea.vmem [#allocation2], 2
    %523 = vst.msk [vmem:[%s522] sm:$0x3] %vm352, %v521
    %s524 = scalar_lea.vmem [#allocation3], 12
    %525 = vst.msk [vmem:[%s524] sm:$0x3] %vm352, %v505
    %v527 = vsel %vm190, %v505, 0
    %529 = vmatprep.subr.mxu0 0.0
    %530 = vmatpush1.msra.mxu0 %v183
    %531 = vmatprep.subr.mxu0 0.0
    %532 = vmatpush1.msra.mxu0 %v184
    %533 = vmatprep.subr.mxu0 0.0
    %534 = vmatpush1.msra.mxu0 %v185
    %535 = vmatprep.subr.mxu0 0.0
    %536 = vmatpush1.msra.mxu0 %v186
    %537 = vmatprep.subr.mxu0 0.0
    %538 = vmatpush1.msra.mxu0 0.0
    %539 = vmatprep.subr.mxu0 0.0
    %540 = vmatpush1.msra.mxu0 0.0
    %541 = vmatprep.subr.mxu0 0.0
    %542 = vmatpush1.msra.mxu0 0.0
    %543 = vmatprep.subr.mxu0 0.0
    %544 = vmatpush1.msra.mxu0 0.0
    %545 = vmatprep.subr.mxu0 0.0
    %546 = vmatpush1.msra.mxu0 0.0
    %547 = vmatprep.subr.mxu0 0.0
    %548 = vmatpush1.msra.mxu0 0.0
    %549 = vmatprep.subr.mxu0 0.0
    %550 = vmatpush1.msra.mxu0 0.0
    %551 = vmatprep.subr.mxu0 0.0
    %552 = vmatpush1.msra.mxu0 0.0
    %553 = vmatprep.subr.mxu0 0.0
    %554 = vmatpush1.msra.mxu0 0.0
    %555 = vmatprep.subr.mxu0 0.0
    %556 = vmatpush1.msra.mxu0 0.0
    %557 = vmatprep.subr.mxu0 0.0
    %558 = vmatpush1.msra.mxu0 0.0
    %559 = vmatprep.subr.mxu0 0.0
    %560 = vmatpush1.msra.mxu0 0.0
    %561 = vmatprep.subr.mxu0 0.0
    %562 = vmatpush1.msra.mxu0 0.0
    %563 = vmatprep.subr.mxu0 0.0
    %564 = vmatpush1.msra.mxu0 0.0
    %565 = vmatprep.subr.mxu0 0.0
    %566 = vmatpush1.msra.mxu0 0.0
    %567 = vmatprep.subr.mxu0 0.0
    %568 = vmatpush1.msra.mxu0 0.0
    %569 = vmatprep.subr.mxu0 0.0
    %570 = vmatpush1.msra.mxu0 0.0
    %571 = vmatprep.subr.mxu0 0.0
    %572 = vmatpush1.msra.mxu0 0.0
    %573 = vmatprep.subr.mxu0 0.0
    %574 = vmatpush1.msra.mxu0 0.0
    %575 = vmatprep.subr.mxu0 0.0
    %576 = vmatpush1.msra.mxu0 0.0
    %577 = vmatprep.subr.mxu0 0.0
    %578 = vmatpush1.msra.mxu0 0.0
    %579 = vmatprep.subr.mxu0 0.0
    %580 = vmatpush1.msra.mxu0 0.0
    %581 = vmatprep.subr.mxu0 0.0
    %582 = vmatpush1.msra.mxu0 0.0
    %583 = vmatprep.subr.mxu0 0.0
    %584 = vmatpush1.msra.mxu0 0.0
    %585 = vmatprep.subr.mxu0 0.0
    %586 = vmatpush1.msra.mxu0 0.0
    %587 = vmatprep.subr.mxu0 0.0
    %588 = vmatpush1.msra.mxu0 0.0
    %589 = vmatprep.subr.mxu0 0.0
    %590 = vmatpush1.msra.mxu0 0.0
    %591 = vmatprep.subr.mxu0 0.0
    %592 = vmatpush1.msra.mxu0 0.0
    %593 = vmatprep.mubr.f32.mxu0 0.0
    %594 = vmatmul.mubr.f32.gmra.mrb[0].mxu0 %v527
    %v595 = vpop.f32.mrb[0].mxu0
    %v596 = vadd.f32 0.0, %v595
    %v597 = vpop.f32.mrb[0].mxu0
    %598 = vdwg.mxu0
    %v600 = vrot.slane %v596, 6
    %v601 = vrot.slane %v596, 7
    %v604 = vadd.f32 %v175, %v600
    %v605 = vadd.f32 %v180, %v601
    %v606 = vxor.u32 %v604, 2147483648
    %v607 = vxor.u32 %v605, 2147483648
    %v608 = vmul.f32 %v606, 1.442695
    %v609 = vpow.pop %v608
    %v610 = vmul.f32 %v607, 1.442695
    %v611 = vpow.pop %v610
    %v612 = vadd.f32 %v609, 1.0
    %v613 = vadd.f32 %v611, 1.0
    %v614 = vrcp.pop %v612
    %v615 = vmul.f32 1.0, %v614
    %v616 = vrcp.pop %v613
    %v617 = vmul.f32 1.0, %v616
    %v618 = vtanh.pop %v604
    %v619 = vtanh.pop %v605
    %v621 = vrot.slane %v513, 6
    %v622 = vrot.slane %v513, 7
    %623 = vrot.lane.b32.xlu0 %v621, 32
    %v624 = vpop.permute.xlu0 %623
    %625 = vrot.lane.b32.xlu0 %v622, 32
    %v626 = vpop.permute.xlu0 %625
    %v629 = vmul.f32 %v615, %v624
    %v630 = vmul.f32 %v617, %v626
    %633 = vrot.lane.b32.xlu0 %v618, 64
    %v634 = vpop.permute.xlu0 %633
    %635 = vrot.lane.b32.xlu0 %v619, 64
    %v636 = vpop.permute.xlu0 %635
    %v639 = vmul.f32 %v615, %v634
    %v640 = vmul.f32 %v617, %v636
    %643 = vrot.lane.b32.xlu0 %v639, 32
    %v644 = vpop.permute.xlu0 %643
    %645 = vrot.lane.b32.xlu0 %v640, 32
    %v646 = vpop.permute.xlu0 %645
    %v649 = vadd.f32 %v629, %v644
    %v650 = vadd.f32 %v630, %v646
    %v651 = vtanh.pop %v649
    %v652 = vtanh.pop %v650
    %655 = vrot.lane.b32.xlu0 %v651, 64
    %v656 = vpop.permute.xlu0 %655
    %657 = vrot.lane.b32.xlu0 %v652, 64
    %v658 = vpop.permute.xlu0 %657
    %v661 = vmul.f32 %v615, %v656
    %v662 = vmul.f32 %v617, %v658
    %vm663 = vcmp.gt.s32.totalorder %v82, 5
    %v664 = vsel %vm663, 1, 0
    %665 = vset.pattern.permute.xlu0 0
    %666 = vperm.xlu0 %665, %v664
    %v667 = vpop.permute.xlu0 %666
    %vm668 = vcmp.eq.s32.totalorder %v667, 1
    %vm669 = vmor %vm320, %vm668
    %v672 = vrot.slane %v661, 2
    %v673 = vrot.slane %v662, 1
    %v674 = vsel %vm330, %v673, %v672
    %675 = vrot.lane.b32.xlu0 %v674, 32
    %v676 = vpop.permute.xlu0 %675
    %v678 = vsel %vm669, %v676, %v505
    %v681 = vrot.slane %v649, 2
    %v682 = vrot.slane %v650, 1
    %v683 = vsel %vm330, %v682, %v681
    %684 = vrot.lane.b32.xlu0 %v683, 96
    %v685 = vpop.permute.xlu0 %684
    %v687 = vsel %vm669, %v685, %v513
    %vm688 = vcmp.le.s32.totalorder %v82, 2
    %v689 = vsel %vm688, 1, 0
    %690 = vset.pattern.permute.xlu0 0
    %691 = vperm.xlu0 %690, %v689
    %v692 = vpop.permute.xlu0 %691
    %vm693 = vcmp.eq.s32.totalorder %v692, 1
    %vm694 = vmand %vm320, %vm693
    %v695 = vsel %vm694, 0.0, %v678
    %s696 = scalar_lea.vmem [#allocation2], 4
    %697 = vst.msk [vmem:[%s696] sm:$0x3] %vm352, %v695
    %s698 = scalar_lea.vmem [#allocation3], 10
    %699 = vst.msk [vmem:[%s698] sm:$0x3] %vm352, %v678
    %v701 = vsel %vm190, %v678, 0
    %703 = vmatprep.subr.mxu0 0.0
    %704 = vmatpush1.msra.mxu0 %v183
    %705 = vmatprep.subr.mxu0 0.0
    %706 = vmatpush1.msra.mxu0 %v184
    %707 = vmatprep.subr.mxu0 0.0
    %708 = vmatpush1.msra.mxu0 %v185
    %709 = vmatprep.subr.mxu0 0.0
    %710 = vmatpush1.msra.mxu0 %v186
    %711 = vmatprep.subr.mxu0 0.0
    %712 = vmatpush1.msra.mxu0 0.0
    %713 = vmatprep.subr.mxu0 0.0
    %714 = vmatpush1.msra.mxu0 0.0
    %715 = vmatprep.subr.mxu0 0.0
    %716 = vmatpush1.msra.mxu0 0.0
    %717 = vmatprep.subr.mxu0 0.0
    %718 = vmatpush1.msra.mxu0 0.0
    %719 = vmatprep.subr.mxu0 0.0
    %720 = vmatpush1.msra.mxu0 0.0
    %721 = vmatprep.subr.mxu0 0.0
    %722 = vmatpush1.msra.mxu0 0.0
    %723 = vmatprep.subr.mxu0 0.0
    %724 = vmatpush1.msra.mxu0 0.0
    %725 = vmatprep.subr.mxu0 0.0
    %726 = vmatpush1.msra.mxu0 0.0
    %727 = vmatprep.subr.mxu0 0.0
    %728 = vmatpush1.msra.mxu0 0.0
    %729 = vmatprep.subr.mxu0 0.0
    %730 = vmatpush1.msra.mxu0 0.0
    %731 = vmatprep.subr.mxu0 0.0
    %732 = vmatpush1.msra.mxu0 0.0
    %733 = vmatprep.subr.mxu0 0.0
    %734 = vmatpush1.msra.mxu0 0.0
    %735 = vmatprep.subr.mxu0 0.0
    %736 = vmatpush1.msra.mxu0 0.0
    %737 = vmatprep.subr.mxu0 0.0
    %738 = vmatpush1.msra.mxu0 0.0
    %739 = vmatprep.subr.mxu0 0.0
    %740 = vmatpush1.msra.mxu0 0.0
    %741 = vmatprep.subr.mxu0 0.0
    %742 = vmatpush1.msra.mxu0 0.0
    %743 = vmatprep.subr.mxu0 0.0
    %744 = vmatpush1.msra.mxu0 0.0
    %745 = vmatprep.subr.mxu0 0.0
    %746 = vmatpush1.msra.mxu0 0.0
    %747 = vmatprep.subr.mxu0 0.0
    %748 = vmatpush1.msra.mxu0 0.0
    %749 = vmatprep.subr.mxu0 0.0
    %750 = vmatpush1.msra.mxu0 0.0
    %751 = vmatprep.subr.mxu0 0.0
    %752 = vmatpush1.msra.mxu0 0.0
    %753 = vmatprep.subr.mxu0 0.0
    %754 = vmatpush1.msra.mxu0 0.0
    %755 = vmatprep.subr.mxu0 0.0
    %756 = vmatpush1.msra.mxu0 0.0
    %757 = vmatprep.subr.mxu0 0.0
    %758 = vmatpush1.msra.mxu0 0.0
    %759 = vmatprep.subr.mxu0 0.0
    %760 = vmatpush1.msra.mxu0 0.0
    %761 = vmatprep.subr.mxu0 0.0
    %762 = vmatpush1.msra.mxu0 0.0
    %763 = vmatprep.subr.mxu0 0.0
    %764 = vmatpush1.msra.mxu0 0.0
    %765 = vmatprep.subr.mxu0 0.0
    %766 = vmatpush1.msra.mxu0 0.0
    %767 = vmatprep.mubr.f32.mxu0 0.0
    %768 = vmatmul.mubr.f32.gmra.mrb[0].mxu0 %v701
    %v769 = vpop.f32.mrb[0].mxu0
    %v770 = vadd.f32 0.0, %v769
    %v771 = vpop.f32.mrb[0].mxu0
    %772 = vdwg.mxu0
    %v774 = vrot.slane %v770, 5
    %v775 = vrot.slane %v770, 6
    %v778 = vadd.f32 %v175, %v774
    %v779 = vadd.f32 %v180, %v775
    %v780 = vxor.u32 %v778, 2147483648
    %v781 = vxor.u32 %v779, 2147483648
    %v782 = vmul.f32 %v780, 1.442695
    %v783 = vpow.pop %v782
    %v784 = vmul.f32 %v781, 1.442695
    %v785 = vpow.pop %v784
    %v786 = vadd.f32 %v783, 1.0
    %v787 = vadd.f32 %v785, 1.0
    %v788 = vrcp.pop %v786
    %v789 = vmul.f32 1.0, %v788
    %v790 = vrcp.pop %v787
    %v791 = vmul.f32 1.0, %v790
    %v792 = vtanh.pop %v778
    %v793 = vtanh.pop %v779
    %v795 = vrot.slane %v687, 5
    %v796 = vrot.slane %v687, 6
    %797 = vrot.lane.b32.xlu0 %v795, 32
    %v798 = vpop.permute.xlu0 %797
    %799 = vrot.lane.b32.xlu0 %v796, 32
    %v800 = vpop.permute.xlu0 %799
    %v803 = vmul.f32 %v789, %v798
    %v804 = vmul.f32 %v791, %v800
    %807 = vrot.lane.b32.xlu0 %v792, 64
    %v808 = vpop.permute.xlu0 %807
    %809 = vrot.lane.b32.xlu0 %v793, 64
    %v810 = vpop.permute.xlu0 %809
    %v813 = vmul.f32 %v789, %v808
    %v814 = vmul.f32 %v791, %v810
    %817 = vrot.lane.b32.xlu0 %v813, 32
    %v818 = vpop.permute.xlu0 %817
    %819 = vrot.lane.b32.xlu0 %v814, 32
    %v820 = vpop.permute.xlu0 %819
    %v823 = vadd.f32 %v803, %v818
    %v824 = vadd.f32 %v804, %v820
    %v825 = vtanh.pop %v823
    %v826 = vtanh.pop %v824
    %829 = vrot.lane.b32.xlu0 %v825, 64
    %v830 = vpop.permute.xlu0 %829
    %831 = vrot.lane.b32.xlu0 %v826, 64
    %v832 = vpop.permute.xlu0 %831
    %v835 = vmul.f32 %v789, %v830
    %v836 = vmul.f32 %v791, %v832
    %vm837 = vcmp.gt.s32.totalorder %v82, 4
    %v838 = vsel %vm837, 1, 0
    %839 = vset.pattern.permute.xlu0 0
    %840 = vperm.xlu0 %839, %v838
    %v841 = vpop.permute.xlu0 %840
    %vm842 = vcmp.eq.s32.totalorder %v841, 1
    %vm843 = vmor %vm320, %vm842
    %v846 = vrot.slane %v835, 3
    %v847 = vrot.slane %v836, 2
    %v848 = vsel %vm330, %v847, %v846
    %849 = vrot.lane.b32.xlu0 %v848, 32
    %v850 = vpop.permute.xlu0 %849
    %v852 = vsel %vm843, %v850, %v678
    %v855 = vrot.slane %v823, 3
    %v856 = vrot.slane %v824, 2
    %v857 = vsel %vm330, %v856, %v855
    %858 = vrot.lane.b32.xlu0 %v857, 96
    %v859 = vpop.permute.xlu0 %858
    %v861 = vsel %vm843, %v859, %v687
    %vm862 = vcmp.le.s32.totalorder %v82, 3
    %v863 = vsel %vm862, 1, 0
    %864 = vset.pattern.permute.xlu0 0
    %865 = vperm.xlu0 %864, %v863
    %v866 = vpop.permute.xlu0 %865
    %vm867 = vcmp.eq.s32.totalorder %v866, 1
    %vm868 = vmand %vm320, %vm867
    %v869 = vsel %vm868, 0.0, %v852
    %s870 = scalar_lea.vmem [#allocation2], 6
    %871 = vst.msk [vmem:[%s870] sm:$0x3] %vm352, %v869
    %s872 = scalar_lea.vmem [#allocation3], 8
    %873 = vst.msk [vmem:[%s872] sm:$0x3] %vm352, %v852
    %v875 = vsel %vm190, %v852, 0
    %877 = vmatprep.subr.mxu0 0.0
    %878 = vmatpush1.msra.mxu0 %v183
    %879 = vmatprep.subr.mxu0 0.0
    %880 = vmatpush1.msra.mxu0 %v184
    %881 = vmatprep.subr.mxu0 0.0
    %882 = vmatpush1.msra.mxu0 %v185
    %883 = vmatprep.subr.mxu0 0.0
    %884 = vmatpush1.msra.mxu0 %v186
    %885 = vmatprep.subr.mxu0 0.0
    %886 = vmatpush1.msra.mxu0 0.0
    %887 = vmatprep.subr.mxu0 0.0
    %888 = vmatpush1.msra.mxu0 0.0
    %889 = vmatprep.subr.mxu0 0.0
    %890 = vmatpush1.msra.mxu0 0.0
    %891 = vmatprep.subr.mxu0 0.0
    %892 = vmatpush1.msra.mxu0 0.0
    %893 = vmatprep.subr.mxu0 0.0
    %894 = vmatpush1.msra.mxu0 0.0
    %895 = vmatprep.subr.mxu0 0.0
    %896 = vmatpush1.msra.mxu0 0.0
    %897 = vmatprep.subr.mxu0 0.0
    %898 = vmatpush1.msra.mxu0 0.0
    %899 = vmatprep.subr.mxu0 0.0
    %900 = vmatpush1.msra.mxu0 0.0
    %901 = vmatprep.subr.mxu0 0.0
    %902 = vmatpush1.msra.mxu0 0.0
    %903 = vmatprep.subr.mxu0 0.0
    %904 = vmatpush1.msra.mxu0 0.0
    %905 = vmatprep.subr.mxu0 0.0
    %906 = vmatpush1.msra.mxu0 0.0
    %907 = vmatprep.subr.mxu0 0.0
    %908 = vmatpush1.msra.mxu0 0.0
    %909 = vmatprep.subr.mxu0 0.0
    %910 = vmatpush1.msra.mxu0 0.0
    %911 = vmatprep.subr.mxu0 0.0
    %912 = vmatpush1.msra.mxu0 0.0
    %913 = vmatprep.subr.mxu0 0.0
    %914 = vmatpush1.msra.mxu0 0.0
    %915 = vmatprep.subr.mxu0 0.0
    %916 = vmatpush1.msra.mxu0 0.0
    %917 = vmatprep.subr.mxu0 0.0
    %918 = vmatpush1.msra.mxu0 0.0
    %919 = vmatprep.subr.mxu0 0.0
    %920 = vmatpush1.msra.mxu0 0.0
    %921 = vmatprep.subr.mxu0 0.0
    %922 = vmatpush1.msra.mxu0 0.0
    %923 = vmatprep.subr.mxu0 0.0
    %924 = vmatpush1.msra.mxu0 0.0
    %925 = vmatprep.subr.mxu0 0.0
    %926 = vmatpush1.msra.mxu0 0.0
    %927 = vmatprep.subr.mxu0 0.0
    %928 = vmatpush1.msra.mxu0 0.0
    %929 = vmatprep.subr.mxu0 0.0
    %930 = vmatpush1.msra.mxu0 0.0
    %931 = vmatprep.subr.mxu0 0.0
    %932 = vmatpush1.msra.mxu0 0.0
    %933 = vmatprep.subr.mxu0 0.0
    %934 = vmatpush1.msra.mxu0 0.0
    %935 = vmatprep.subr.mxu0 0.0
    %936 = vmatpush1.msra.mxu0 0.0
    %937 = vmatprep.subr.mxu0 0.0
    %938 = vmatpush1.msra.mxu0 0.0
    %939 = vmatprep.subr.mxu0 0.0
    %940 = vmatpush1.msra.mxu0 0.0
    %941 = vmatprep.mubr.f32.mxu0 0.0
    %942 = vmatmul.mubr.f32.gmra.mrb[0].mxu0 %v875
    %v943 = vpop.f32.mrb[0].mxu0
    %v944 = vadd.f32 0.0, %v943
    %v945 = vpop.f32.mrb[0].mxu0
    %946 = vdwg.mxu0
    %v948 = vrot.slane %v944, 4
    %v949 = vrot.slane %v944, 5
    %v952 = vadd.f32 %v175, %v948
    %v953 = vadd.f32 %v180, %v949
    %v954 = vxor.u32 %v952, 2147483648
    %v955 = vxor.u32 %v953, 2147483648
    %v956 = vmul.f32 %v954, 1.442695
    %v957 = vpow.pop %v956
    %v958 = vmul.f32 %v955, 1.442695
    %v959 = vpow.pop %v958
    %v960 = vadd.f32 %v957, 1.0
    %v961 = vadd.f32 %v959, 1.0
    %v962 = vrcp.pop %v960
    %v963 = vmul.f32 1.0, %v962
    %v964 = vrcp.pop %v961
    %v965 = vmul.f32 1.0, %v964
    %v966 = vtanh.pop %v952
    %v967 = vtanh.pop %v953
    %v969 = vrot.slane %v861, 4
    %v970 = vrot.slane %v861, 5
    %971 = vrot.lane.b32.xlu0 %v969, 32
    %v972 = vpop.permute.xlu0 %971
    %973 = vrot.lane.b32.xlu0 %v970, 32
    %v974 = vpop.permute.xlu0 %973
    %v977 = vmul.f32 %v963, %v972
    %v978 = vmul.f32 %v965, %v974
    %981 = vrot.lane.b32.xlu0 %v966, 64
    %v982 = vpop.permute.xlu0 %981
    %983 = vrot.lane.b32.xlu0 %v967, 64
    %v984 = vpop.permute.xlu0 %983
    %v987 = vmul.f32 %v963, %v982
    %v988 = vmul.f32 %v965, %v984
    %991 = vrot.lane.b32.xlu0 %v987, 32
    %v992 = vpop.permute.xlu0 %991
    %993 = vrot.lane.b32.xlu0 %v988, 32
    %v994 = vpop.permute.xlu0 %993
    %v997 = vadd.f32 %v977, %v992
    %v998 = vadd.f32 %v978, %v994
    %v999 = vtanh.pop %v997
    %v1000 = vtanh.pop %v998
    %1003 = vrot.lane.b32.xlu0 %v999, 64
    %v1004 = vpop.permute.xlu0 %1003
    %1005 = vrot.lane.b32.xlu0 %v1000, 64
    %v1006 = vpop.permute.xlu0 %1005
    %v1009 = vmul.f32 %v963, %v1004
    %v1010 = vmul.f32 %v965, %v1006
    %vm1011 = vcmp.gt.s32.totalorder %v82, 3
    %v1012 = vsel %vm1011, 1, 0
    %1013 = vset.pattern.permute.xlu0 0
    %1014 = vperm.xlu0 %1013, %v1012
    %v1015 = vpop.permute.xlu0 %1014
    %vm1016 = vcmp.eq.s32.totalorder %v1015, 1
    %vm1017 = vmor %vm320, %vm1016
    %v1020 = vrot.slane %v1009, 4
    %v1021 = vrot.slane %v1010, 3
    %v1022 = vsel %vm330, %v1021, %v1020
    %1023 = vrot.lane.b32.xlu0 %v1022, 32
    %v1024 = vpop.permute.xlu0 %1023
    %v1026 = vsel %vm1017, %v1024, %v852
    %v1029 = vrot.slane %v997, 4
    %v1030 = vrot.slane %v998, 3
    %v1031 = vsel %vm330, %v1030, %v1029
    %1032 = vrot.lane.b32.xlu0 %v1031, 96
    %v1033 = vpop.permute.xlu0 %1032
    %v1035 = vsel %vm1017, %v1033, %v861
    %vm1036 = vcmp.le.s32.totalorder %v82, 4
    %v1037 = vsel %vm1036, 1, 0
    %1038 = vset.pattern.permute.xlu0 0
    %1039 = vperm.xlu0 %1038, %v1037
    %v1040 = vpop.permute.xlu0 %1039
    %vm1041 = vcmp.eq.s32.totalorder %v1040, 1
    %vm1042 = vmand %vm320, %vm1041
    %v1043 = vsel %vm1042, 0.0, %v1026
    %s1044 = scalar_lea.vmem [#allocation2], 8
    %1045 = vst.msk [vmem:[%s1044] sm:$0x3] %vm352, %v1043
    %s1046 = scalar_lea.vmem [#allocation3], 6
    %1047 = vst.msk [vmem:[%s1046] sm:$0x3] %vm352, %v1026
    %v1049 = vsel %vm190, %v1026, 0
    %1051 = vmatprep.subr.mxu0 0.0
    %1052 = vmatpush1.msra.mxu0 %v183
    %1053 = vmatprep.subr.mxu0 0.0
    %1054 = vmatpush1.msra.mxu0 %v184
    %1055 = vmatprep.subr.mxu0 0.0
    %1056 = vmatpush1.msra.mxu0 %v185
    %1057 = vmatprep.subr.mxu0 0.0
    %1058 = vmatpush1.msra.mxu0 %v186
    %1059 = vmatprep.subr.mxu0 0.0
    %1060 = vmatpush1.msra.mxu0 0.0
    %1061 = vmatprep.subr.mxu0 0.0
    %1062 = vmatpush1.msra.mxu0 0.0
    %1063 = vmatprep.subr.mxu0 0.0
    %1064 = vmatpush1.msra.mxu0 0.0
    %1065 = vmatprep.subr.mxu0 0.0
    %1066 = vmatpush1.msra.mxu0 0.0
    %1067 = vmatprep.subr.mxu0 0.0
    %1068 = vmatpush1.msra.mxu0 0.0
    %1069 = vmatprep.subr.mxu0 0.0
    %1070 = vmatpush1.msra.mxu0 0.0
    %1071 = vmatprep.subr.mxu0 0.0
    %1072 = vmatpush1.msra.mxu0 0.0
    %1073 = vmatprep.subr.mxu0 0.0
    %1074 = vmatpush1.msra.mxu0 0.0
    %1075 = vmatprep.subr.mxu0 0.0
    %1076 = vmatpush1.msra.mxu0 0.0
    %1077 = vmatprep.subr.mxu0 0.0
    %1078 = vmatpush1.msra.mxu0 0.0
    %1079 = vmatprep.subr.mxu0 0.0
    %1080 = vmatpush1.msra.mxu0 0.0
    %1081 = vmatprep.subr.mxu0 0.0
    %1082 = vmatpush1.msra.mxu0 0.0
    %1083 = vmatprep.subr.mxu0 0.0
    %1084 = vmatpush1.msra.mxu0 0.0
    %1085 = vmatprep.subr.mxu0 0.0
    %1086 = vmatpush1.msra.mxu0 0.0
    %1087 = vmatprep.subr.mxu0 0.0
    %1088 = vmatpush1.msra.mxu0 0.0
    %1089 = vmatprep.subr.mxu0 0.0
    %1090 = vmatpush1.msra.mxu0 0.0
    %1091 = vmatprep.subr.mxu0 0.0
    %1092 = vmatpush1.msra.mxu0 0.0
    %1093 = vmatprep.subr.mxu0 0.0
    %1094 = vmatpush1.msra.mxu0 0.0
    %1095 = vmatprep.subr.mxu0 0.0
    %1096 = vmatpush1.msra.mxu0 0.0
    %1097 = vmatprep.subr.mxu0 0.0
    %1098 = vmatpush1.msra.mxu0 0.0
    %1099 = vmatprep.subr.mxu0 0.0
    %1100 = vmatpush1.msra.mxu0 0.0
    %1101 = vmatprep.subr.mxu0 0.0
    %1102 = vmatpush1.msra.mxu0 0.0
    %1103 = vmatprep.subr.mxu0 0.0
    %1104 = vmatpush1.msra.mxu0 0.0
    %1105 = vmatprep.subr.mxu0 0.0
    %1106 = vmatpush1.msra.mxu0 0.0
    %1107 = vmatprep.subr.mxu0 0.0
    %1108 = vmatpush1.msra.mxu0 0.0
    %1109 = vmatprep.subr.mxu0 0.0
    %1110 = vmatpush1.msra.mxu0 0.0
    %1111 = vmatprep.subr.mxu0 0.0
    %1112 = vmatpush1.msra.mxu0 0.0
    %1113 = vmatprep.subr.mxu0 0.0
    %1114 = vmatpush1.msra.mxu0 0.0
    %1115 = vmatprep.mubr.f32.mxu0 0.0
    %1116 = vmatmul.mubr.f32.gmra.mrb[0].mxu0 %v1049
    %v1117 = vpop.f32.mrb[0].mxu0
    %v1118 = vadd.f32 0.0, %v1117
    %v1119 = vpop.f32.mrb[0].mxu0
    %1120 = vdwg.mxu0
    %v1122 = vrot.slane %v1118, 3
    %v1123 = vrot.slane %v1118, 4
    %v1126 = vadd.f32 %v175, %v1122
    %v1127 = vadd.f32 %v180, %v1123
    %v1128 = vxor.u32 %v1126, 2147483648
    %v1129 = vxor.u32 %v1127, 2147483648
    %v1130 = vmul.f32 %v1128, 1.442695
    %v1131 = vpow.pop %v1130
    %v1132 = vmul.f32 %v1129, 1.442695
    %v1133 = vpow.pop %v1132
    %v1134 = vadd.f32 %v1131, 1.0
    %v1135 = vadd.f32 %v1133, 1.0
    %v1136 = vrcp.pop %v1134
    %v1137 = vmul.f32 1.0, %v1136
    %v1138 = vrcp.pop %v1135
    %v1139 = vmul.f32 1.0, %v1138
    %v1140 = vtanh.pop %v1126
    %v1141 = vtanh.pop %v1127
    %v1143 = vrot.slane %v1035, 3
    %v1144 = vrot.slane %v1035, 4
    %1145 = vrot.lane.b32.xlu0 %v1143, 32
    %v1146 = vpop.permute.xlu0 %1145
    %1147 = vrot.lane.b32.xlu0 %v1144, 32
    %v1148 = vpop.permute.xlu0 %1147
    %v1151 = vmul.f32 %v1137, %v1146
    %v1152 = vmul.f32 %v1139, %v1148
    %1155 = vrot.lane.b32.xlu0 %v1140, 64
    %v1156 = vpop.permute.xlu0 %1155
    %1157 = vrot.lane.b32.xlu0 %v1141, 64
    %v1158 = vpop.permute.xlu0 %1157
    %v1161 = vmul.f32 %v1137, %v1156
    %v1162 = vmul.f32 %v1139, %v1158
    %1165 = vrot.lane.b32.xlu0 %v1161, 32
    %v1166 = vpop.permute.xlu0 %1165
    %1167 = vrot.lane.b32.xlu0 %v1162, 32
    %v1168 = vpop.permute.xlu0 %1167
    %v1171 = vadd.f32 %v1151, %v1166
    %v1172 = vadd.f32 %v1152, %v1168
    %v1173 = vtanh.pop %v1171
    %v1174 = vtanh.pop %v1172
    %1177 = vrot.lane.b32.xlu0 %v1173, 64
    %v1178 = vpop.permute.xlu0 %1177
    %1179 = vrot.lane.b32.xlu0 %v1174, 64
    %v1180 = vpop.permute.xlu0 %1179
    %v1183 = vmul.f32 %v1137, %v1178
    %v1184 = vmul.f32 %v1139, %v1180
    %vm1185 = vcmp.gt.s32.totalorder %v82, 2
    %v1186 = vsel %vm1185, 1, 0
    %1187 = vset.pattern.permute.xlu0 0
    %1188 = vperm.xlu0 %1187, %v1186
    %v1189 = vpop.permute.xlu0 %1188
    %vm1190 = vcmp.eq.s32.totalorder %v1189, 1
    %vm1191 = vmor %vm320, %vm1190
    %v1194 = vrot.slane %v1183, 5
    %v1195 = vrot.slane %v1184, 4
    %v1196 = vsel %vm330, %v1195, %v1194
    %1197 = vrot.lane.b32.xlu0 %v1196, 32
    %v1198 = vpop.permute.xlu0 %1197
    %v1200 = vsel %vm1191, %v1198, %v1026
    %v1203 = vrot.slane %v1171, 5
    %v1204 = vrot.slane %v1172, 4
    %v1205 = vsel %vm330, %v1204, %v1203
    %1206 = vrot.lane.b32.xlu0 %v1205, 96
    %v1207 = vpop.permute.xlu0 %1206
    %v1209 = vsel %vm1191, %v1207, %v1035
    %vm1210 = vcmp.le.s32.totalorder %v82, 5
    %v1211 = vsel %vm1210, 1, 0
    %1212 = vset.pattern.permute.xlu0 0
    %1213 = vperm.xlu0 %1212, %v1211
    %v1214 = vpop.permute.xlu0 %1213
    %vm1215 = vcmp.eq.s32.totalorder %v1214, 1
    %vm1216 = vmand %vm320, %vm1215
    %v1217 = vsel %vm1216, 0.0, %v1200
    %s1218 = scalar_lea.vmem [#allocation2], 10
    %1219 = vst.msk [vmem:[%s1218] sm:$0x3] %vm352, %v1217
    %s1220 = scalar_lea.vmem [#allocation3], 4
    %1221 = vst.msk [vmem:[%s1220] sm:$0x3] %vm352, %v1200
    %v1223 = vsel %vm190, %v1200, 0
    %1225 = vmatprep.subr.mxu0 0.0
    %1226 = vmatpush1.msra.mxu0 %v183
    %1227 = vmatprep.subr.mxu0 0.0
    %1228 = vmatpush1.msra.mxu0 %v184
    %1229 = vmatprep.subr.mxu0 0.0
    %1230 = vmatpush1.msra.mxu0 %v185
    %1231 = vmatprep.subr.mxu0 0.0
    %1232 = vmatpush1.msra.mxu0 %v186
    %1233 = vmatprep.subr.mxu0 0.0
    %1234 = vmatpush1.msra.mxu0 0.0
    %1235 = vmatprep.subr.mxu0 0.0
    %1236 = vmatpush1.msra.mxu0 0.0
    %1237 = vmatprep.subr.mxu0 0.0
    %1238 = vmatpush1.msra.mxu0 0.0
    %1239 = vmatprep.subr.mxu0 0.0
    %1240 = vmatpush1.msra.mxu0 0.0
    %1241 = vmatprep.subr.mxu0 0.0
    %1242 = vmatpush1.msra.mxu0 0.0
    %1243 = vmatprep.subr.mxu0 0.0
    %1244 = vmatpush1.msra.mxu0 0.0
    %1245 = vmatprep.subr.mxu0 0.0
    %1246 = vmatpush1.msra.mxu0 0.0
    %1247 = vmatprep.subr.mxu0 0.0
    %1248 = vmatpush1.msra.mxu0 0.0
    %1249 = vmatprep.subr.mxu0 0.0
    %1250 = vmatpush1.msra.mxu0 0.0
    %1251 = vmatprep.subr.mxu0 0.0
    %1252 = vmatpush1.msra.mxu0 0.0
    %1253 = vmatprep.subr.mxu0 0.0
    %1254 = vmatpush1.msra.mxu0 0.0
    %1255 = vmatprep.subr.mxu0 0.0
    %1256 = vmatpush1.msra.mxu0 0.0
    %1257 = vmatprep.subr.mxu0 0.0
    %1258 = vmatpush1.msra.mxu0 0.0
    %1259 = vmatprep.subr.mxu0 0.0
    %1260 = vmatpush1.msra.mxu0 0.0
    %1261 = vmatprep.subr.mxu0 0.0
    %1262 = vmatpush1.msra.mxu0 0.0
    %1263 = vmatprep.subr.mxu0 0.0
    %1264 = vmatpush1.msra.mxu0 0.0
    %1265 = vmatprep.subr.mxu0 0.0
    %1266 = vmatpush1.msra.mxu0 0.0
    %1267 = vmatprep.subr.mxu0 0.0
    %1268 = vmatpush1.msra.mxu0 0.0
    %1269 = vmatprep.subr.mxu0 0.0
    %1270 = vmatpush1.msra.mxu0 0.0
    %1271 = vmatprep.subr.mxu0 0.0
    %1272 = vmatpush1.msra.mxu0 0.0
    %1273 = vmatprep.subr.mxu0 0.0
    %1274 = vmatpush1.msra.mxu0 0.0
    %1275 = vmatprep.subr.mxu0 0.0
    %1276 = vmatpush1.msra.mxu0 0.0
    %1277 = vmatprep.subr.mxu0 0.0
    %1278 = vmatpush1.msra.mxu0 0.0
    %1279 = vmatprep.subr.mxu0 0.0
    %1280 = vmatpush1.msra.mxu0 0.0
    %1281 = vmatprep.subr.mxu0 0.0
    %1282 = vmatpush1.msra.mxu0 0.0
    %1283 = vmatprep.subr.mxu0 0.0
    %1284 = vmatpush1.msra.mxu0 0.0
    %1285 = vmatprep.subr.mxu0 0.0
    %1286 = vmatpush1.msra.mxu0 0.0
    %1287 = vmatprep.subr.mxu0 0.0
    %1288 = vmatpush1.msra.mxu0 0.0
    %1289 = vmatprep.mubr.f32.mxu0 0.0
    %1290 = vmatmul.mubr.f32.gmra.mrb[0].mxu0 %v1223
    %v1291 = vpop.f32.mrb[0].mxu0
    %v1292 = vadd.f32 0.0, %v1291
    %v1293 = vpop.f32.mrb[0].mxu0
    %1294 = vdwg.mxu0
    %v1296 = vrot.slane %v1292, 2
    %v1297 = vrot.slane %v1292, 3
    %v1300 = vadd.f32 %v175, %v1296
    %v1301 = vadd.f32 %v180, %v1297
    %v1302 = vxor.u32 %v1300, 2147483648
    %v1303 = vxor.u32 %v1301, 2147483648
    %v1304 = vmul.f32 %v1302, 1.442695
    %v1305 = vpow.pop %v1304
    %v1306 = vmul.f32 %v1303, 1.442695
    %v1307 = vpow.pop %v1306
    %v1308 = vadd.f32 %v1305, 1.0
    %v1309 = vadd.f32 %v1307, 1.0
    %v1310 = vrcp.pop %v1308
    %v1311 = vmul.f32 1.0, %v1310
    %v1312 = vrcp.pop %v1309
    %v1313 = vmul.f32 1.0, %v1312
    %v1314 = vtanh.pop %v1300
    %v1315 = vtanh.pop %v1301
    %v1317 = vrot.slane %v1209, 2
    %v1318 = vrot.slane %v1209, 3
    %1319 = vrot.lane.b32.xlu0 %v1317, 32
    %v1320 = vpop.permute.xlu0 %1319
    %1321 = vrot.lane.b32.xlu0 %v1318, 32
    %v1322 = vpop.permute.xlu0 %1321
    %v1325 = vmul.f32 %v1311, %v1320
    %v1326 = vmul.f32 %v1313, %v1322
    %1329 = vrot.lane.b32.xlu0 %v1314, 64
    %v1330 = vpop.permute.xlu0 %1329
    %1331 = vrot.lane.b32.xlu0 %v1315, 64
    %v1332 = vpop.permute.xlu0 %1331
    %v1335 = vmul.f32 %v1311, %v1330
    %v1336 = vmul.f32 %v1313, %v1332
    %1339 = vrot.lane.b32.xlu0 %v1335, 32
    %v1340 = vpop.permute.xlu0 %1339
    %1341 = vrot.lane.b32.xlu0 %v1336, 32
    %v1342 = vpop.permute.xlu0 %1341
    %v1345 = vadd.f32 %v1325, %v1340
    %v1346 = vadd.f32 %v1326, %v1342
    %v1347 = vtanh.pop %v1345
    %v1348 = vtanh.pop %v1346
    %1351 = vrot.lane.b32.xlu0 %v1347, 64
    %v1352 = vpop.permute.xlu0 %1351
    %1353 = vrot.lane.b32.xlu0 %v1348, 64
    %v1354 = vpop.permute.xlu0 %1353
    %v1357 = vmul.f32 %v1311, %v1352
    %v1358 = vmul.f32 %v1313, %v1354
    %vm1359 = vcmp.gt.s32.totalorder %v82, 1
    %v1360 = vsel %vm1359, 1, 0
    %1361 = vset.pattern.permute.xlu0 0
    %1362 = vperm.xlu0 %1361, %v1360
    %v1363 = vpop.permute.xlu0 %1362
    %vm1364 = vcmp.eq.s32.totalorder %v1363, 1
    %vm1365 = vmor %vm320, %vm1364
    %v1368 = vrot.slane %v1357, 6
    %v1369 = vrot.slane %v1358, 5
    %v1370 = vsel %vm330, %v1369, %v1368
    %1371 = vrot.lane.b32.xlu0 %v1370, 32
    %v1372 = vpop.permute.xlu0 %1371
    %v1374 = vsel %vm1365, %v1372, %v1200
    %v1377 = vrot.slane %v1345, 6
    %v1378 = vrot.slane %v1346, 5
    %v1379 = vsel %vm330, %v1378, %v1377
    %1380 = vrot.lane.b32.xlu0 %v1379, 96
    %v1381 = vpop.permute.xlu0 %1380
    %v1383 = vsel %vm1365, %v1381, %v1209
    %vm1384 = vcmp.le.s32.totalorder %v82, 6
    %v1385 = vsel %vm1384, 1, 0
    %1386 = vset.pattern.permute.xlu0 0
    %1387 = vperm.xlu0 %1386, %v1385
    %v1388 = vpop.permute.xlu0 %1387
    %vm1389 = vcmp.eq.s32.totalorder %v1388, 1
    %vm1390 = vmand %vm320, %vm1389
    %v1391 = vsel %vm1390, 0.0, %v1374
    %s1392 = scalar_lea.vmem [#allocation2], 12
    %1393 = vst.msk [vmem:[%s1392] sm:$0x3] %vm352, %v1391
    %s1394 = scalar_lea.vmem [#allocation3], 2
    %1395 = vst.msk [vmem:[%s1394] sm:$0x3] %vm352, %v1374
    %v1397 = vsel %vm190, %v1374, 0
    %1399 = vmatprep.subr.mxu0 0.0
    %1400 = vmatpush1.msra.mxu0 %v183
    %1401 = vmatprep.subr.mxu0 0.0
    %1402 = vmatpush1.msra.mxu0 %v184
    %1403 = vmatprep.subr.mxu0 0.0
    %1404 = vmatpush1.msra.mxu0 %v185
    %1405 = vmatprep.subr.mxu0 0.0
    %1406 = vmatpush1.msra.mxu0 %v186
    %1407 = vmatprep.subr.mxu0 0.0
    %1408 = vmatpush1.msra.mxu0 0.0
    %1409 = vmatprep.subr.mxu0 0.0
    %1410 = vmatpush1.msra.mxu0 0.0
    %1411 = vmatprep.subr.mxu0 0.0
    %1412 = vmatpush1.msra.mxu0 0.0
    %1413 = vmatprep.subr.mxu0 0.0
    %1414 = vmatpush1.msra.mxu0 0.0
    %1415 = vmatprep.subr.mxu0 0.0
    %1416 = vmatpush1.msra.mxu0 0.0
    %1417 = vmatprep.subr.mxu0 0.0
    %1418 = vmatpush1.msra.mxu0 0.0
    %1419 = vmatprep.subr.mxu0 0.0
    %1420 = vmatpush1.msra.mxu0 0.0
    %1421 = vmatprep.subr.mxu0 0.0
    %1422 = vmatpush1.msra.mxu0 0.0
    %1423 = vmatprep.subr.mxu0 0.0
    %1424 = vmatpush1.msra.mxu0 0.0
    %1425 = vmatprep.subr.mxu0 0.0
    %1426 = vmatpush1.msra.mxu0 0.0
    %1427 = vmatprep.subr.mxu0 0.0
    %1428 = vmatpush1.msra.mxu0 0.0
    %1429 = vmatprep.subr.mxu0 0.0
    %1430 = vmatpush1.msra.mxu0 0.0
    %1431 = vmatprep.subr.mxu0 0.0
    %1432 = vmatpush1.msra.mxu0 0.0
    %1433 = vmatprep.subr.mxu0 0.0
    %1434 = vmatpush1.msra.mxu0 0.0
    %1435 = vmatprep.subr.mxu0 0.0
    %1436 = vmatpush1.msra.mxu0 0.0
    %1437 = vmatprep.subr.mxu0 0.0
    %1438 = vmatpush1.msra.mxu0 0.0
    %1439 = vmatprep.subr.mxu0 0.0
    %1440 = vmatpush1.msra.mxu0 0.0
    %1441 = vmatprep.subr.mxu0 0.0
    %1442 = vmatpush1.msra.mxu0 0.0
    %1443 = vmatprep.subr.mxu0 0.0
    %1444 = vmatpush1.msra.mxu0 0.0
    %1445 = vmatprep.subr.mxu0 0.0
    %1446 = vmatpush1.msra.mxu0 0.0
    %1447 = vmatprep.subr.mxu0 0.0
    %1448 = vmatpush1.msra.mxu0 0.0
    %1449 = vmatprep.subr.mxu0 0.0
    %1450 = vmatpush1.msra.mxu0 0.0
    %1451 = vmatprep.subr.mxu0 0.0
    %1452 = vmatpush1.msra.mxu0 0.0
    %1453 = vmatprep.subr.mxu0 0.0
    %1454 = vmatpush1.msra.mxu0 0.0
    %1455 = vmatprep.subr.mxu0 0.0
    %1456 = vmatpush1.msra.mxu0 0.0
    %1457 = vmatprep.subr.mxu0 0.0
    %1458 = vmatpush1.msra.mxu0 0.0
    %1459 = vmatprep.subr.mxu0 0.0
    %1460 = vmatpush1.msra.mxu0 0.0
    %1461 = vmatprep.subr.mxu0 0.0
    %1462 = vmatpush1.msra.mxu0 0.0
    %1463 = vmatprep.mubr.f32.mxu0 0.0
    %1464 = vmatmul.mubr.f32.gmra.mrb[0].mxu0 %v1397
    %v1465 = vpop.f32.mrb[0].mxu0
    %v1466 = vadd.f32 0.0, %v1465
    %v1467 = vpop.f32.mrb[0].mxu0
    %1468 = vdwg.mxu0
    %v1470 = vrot.slane %v1466, 1
    %v1471 = vrot.slane %v1466, 2
    %v1474 = vadd.f32 %v175, %v1470
    %v1475 = vadd.f32 %v180, %v1471
    %v1476 = vxor.u32 %v1474, 2147483648
    %v1477 = vxor.u32 %v1475, 2147483648
    %v1478 = vmul.f32 %v1476, 1.442695
    %v1479 = vpow.pop %v1478
    %v1480 = vmul.f32 %v1477, 1.442695
    %v1481 = vpow.pop %v1480
    %v1482 = vadd.f32 %v1479, 1.0
    %v1483 = vadd.f32 %v1481, 1.0
    %v1484 = vrcp.pop %v1482
    %v1485 = vmul.f32 1.0, %v1484
    %v1486 = vrcp.pop %v1483
    %v1487 = vmul.f32 1.0, %v1486
    %v1488 = vtanh.pop %v1474
    %v1489 = vtanh.pop %v1475
    %v1491 = vrot.slane %v1383, 1
    %v1492 = vrot.slane %v1383, 2
    %1493 = vrot.lane.b32.xlu0 %v1491, 32
    %v1494 = vpop.permute.xlu0 %1493
    %1495 = vrot.lane.b32.xlu0 %v1492, 32
    %v1496 = vpop.permute.xlu0 %1495
    %v1499 = vmul.f32 %v1485, %v1494
    %v1500 = vmul.f32 %v1487, %v1496
    %1503 = vrot.lane.b32.xlu0 %v1488, 64
    %v1504 = vpop.permute.xlu0 %1503
    %1505 = vrot.lane.b32.xlu0 %v1489, 64
    %v1506 = vpop.permute.xlu0 %1505
    %v1509 = vmul.f32 %v1485, %v1504
    %v1510 = vmul.f32 %v1487, %v1506
    %1513 = vrot.lane.b32.xlu0 %v1509, 32
    %v1514 = vpop.permute.xlu0 %1513
    %1515 = vrot.lane.b32.xlu0 %v1510, 32
    %v1516 = vpop.permute.xlu0 %1515
    %v1519 = vadd.f32 %v1499, %v1514
    %v1520 = vadd.f32 %v1500, %v1516
    %v1521 = vtanh.pop %v1519
    %v1522 = vtanh.pop %v1520
    %1525 = vrot.lane.b32.xlu0 %v1521, 64
    %v1526 = vpop.permute.xlu0 %1525
    %1527 = vrot.lane.b32.xlu0 %v1522, 64
    %v1528 = vpop.permute.xlu0 %1527
    %v1531 = vmul.f32 %v1485, %v1526
    %v1532 = vmul.f32 %v1487, %v1528
    %vm1533 = vcmp.gt.s32.totalorder %v82, 0
    %v1534 = vsel %vm1533, 1, 0
    %1535 = vset.pattern.permute.xlu0 0
    %1536 = vperm.xlu0 %1535, %v1534
    %v1537 = vpop.permute.xlu0 %1536
    %vm1538 = vcmp.eq.s32.totalorder %v1537, 1
    %vm1539 = vmor %vm320, %vm1538
    %v1542 = vrot.slane %v1531, 7
    %v1543 = vrot.slane %v1532, 6
    %v1544 = vsel %vm330, %v1543, %v1542
    %1545 = vrot.lane.b32.xlu0 %v1544, 32
    %v1546 = vpop.permute.xlu0 %1545
    %v1548 = vsel %vm1539, %v1546, %v1374
    %vm1549 = vcmp.le.s32.totalorder %v82, 7
    %v1550 = vsel %vm1549, 1, 0
    %1551 = vset.pattern.permute.xlu0 0
    %1552 = vperm.xlu0 %1551, %v1550
    %v1553 = vpop.permute.xlu0 %1552
    %vm1554 = vcmp.eq.s32.totalorder %v1553, 1
    %vm1555 = vmand %vm320, %vm1554
    %v1556 = vsel %vm1555, 0.0, %v1548
    %s1557 = scalar_lea.vmem [#allocation2], 14
    %1558 = vst.msk [vmem:[%s1557] sm:$0x3] %vm352, %v1556
    %1559 = vst.msk [vmem:[#allocation3] sm:$0x3] %vm352, %v1548
    %v1560 = vld [vmem:[#allocation2] sm:$0x3]
    %v1561 = vld [vmem:[#allocation2 + $0x2] sm:$0x3]
    %v1562 = vld [vmem:[#allocation2 + $0x4] sm:$0x3]
    %v1563 = vld [vmem:[#allocation2 + $0x6] sm:$0x3]
    %v1564 = vld [vmem:[#allocation2 + $0x8] sm:$0x3]
    %v1565 = vld [vmem:[#allocation2 + $0xa] sm:$0x3]
    %v1566 = vld [vmem:[#allocation2 + $0xc] sm:$0x3]
    %v1567 = vld [vmem:[#allocation2 + $0xe] sm:$0x3]
    %v1568 = vld [vmem:[#allocation3] sm:$0x3]
    %v1569 = vld [vmem:[#allocation3 + $0x2] sm:$0x3]
    %v1570 = vld [vmem:[#allocation3 + $0x4] sm:$0x3]
    %v1571 = vld [vmem:[#allocation3 + $0x6] sm:$0x3]
    %v1572 = vld [vmem:[#allocation3 + $0x8] sm:$0x3]
    %v1573 = vld [vmem:[#allocation3 + $0xa] sm:$0x3]
    %v1574 = vld [vmem:[#allocation3 + $0xc] sm:$0x3]
    %v1575 = vld [vmem:[#allocation3 + $0xe] sm:$0x3]
    %v1576 = vld [vmem:[#allocation10] sm:$0xff]
    %v1577 = vld [vmem:[#allocation10 + $0x8] sm:$0xff]
    %v1578 = vld [vmem:[#allocation10 + $0x10] sm:$0xff]
    %v1579 = vld [vmem:[#allocation10 + $0x18] sm:$0xff]
    %v1588 = vcombine.low %v1568, %v1569
    %v1589 = vcombine.low %v1570, %v1571
    %v1591 = vunpack.c.l.s4 1983009808
    %v1592 = vunpack.c.0.s8 %v1591
    %v1593 = vlaneseq
    %v1594 = vshrl.u32 %v1593, 7
    %v1595 = vsub.s32 %v1592, %v1594
    %v1596 = vrot.slane %v1588, %v1595
    %v1598 = vunpack.c.l.s4 1983009808
    %v1599 = vunpack.c.0.s8 %v1598
    %v1600 = vlaneseq
    %v1601 = vshrl.u32 %v1600, 7
    %v1602 = vsub.s32 %v1599, %v1601
    %v1603 = vrot.slane %v1589, %v1602
    %v1604 = vcombine.low %v1596, %v1603
    %v1605 = vcombine.low %v1572, %v1573
    %v1606 = vcombine.low %v1574, %v1575
    %v1608 = vunpack.c.l.s4 1983009808
    %v1609 = vunpack.c.0.s8 %v1608
    %v1610 = vlaneseq
    %v1611 = vshrl.u32 %v1610, 7
    %v1612 = vsub.s32 %v1609, %v1611
    %v1613 = vrot.slane %v1605, %v1612
    %v1615 = vunpack.c.l.s4 1983009808
    %v1616 = vunpack.c.0.s8 %v1615
    %v1617 = vlaneseq
    %v1618 = vshrl.u32 %v1617, 7
    %v1619 = vsub.s32 %v1616, %v1618
    %v1620 = vrot.slane %v1606, %v1619
    %v1621 = vcombine.low %v1613, %v1620
    %1622 = vrot.lane.b32.xlu0 %v1604, 112
    %v1623 = vpop.permute.xlu0 %1622
    %1624 = vrot.lane.b32.xlu0 %v1621, 112
    %v1625 = vpop.permute.xlu0 %1624
    %vm1626 = vcmask 130048
    %v1627 = vsel %vm1626, %v1623, 0
    %v1629 = vsel %vm1626, %v1625, 0
    %1631 = vmatprep.subr.mxu0 0.0
    %1632 = vmatpush1.msra.mxu0 %v1578
    %1633 = vmatprep.subr.mxu0 0.0
    %1634 = vmatpush1.msra.mxu0 %v1579
    %1635 = vmatprep.subr.mxu0 0.0
    %1636 = vmatpush1.msra.mxu0 0.0
    %1637 = vmatprep.subr.mxu0 0.0
    %1638 = vmatpush1.msra.mxu0 0.0
    %1639 = vmatprep.subr.mxu0 0.0
    %1640 = vmatpush1.msra.mxu0 0.0
    %1641 = vmatprep.subr.mxu0 0.0
    %1642 = vmatpush1.msra.mxu0 0.0
    %1643 = vmatprep.subr.mxu0 0.0
    %1644 = vmatpush1.msra.mxu0 0.0
    %1645 = vmatprep.subr.mxu0 0.0
    %1646 = vmatpush1.msra.mxu0 0.0
    %1647 = vmatprep.subr.mxu0 0.0
    %1648 = vmatpush1.msra.mxu0 0.0
    %1649 = vmatprep.subr.mxu0 0.0
    %1650 = vmatpush1.msra.mxu0 0.0
    %1651 = vmatprep.subr.mxu0 0.0
    %1652 = vmatpush1.msra.mxu0 0.0
    %1653 = vmatprep.subr.mxu0 0.0
    %1654 = vmatpush1.msra.mxu0 0.0
    %1655 = vmatprep.subr.mxu0 0.0
    %1656 = vmatpush1.msra.mxu0 0.0
    %1657 = vmatprep.subr.mxu0 0.0
    %1658 = vmatpush1.msra.mxu0 0.0
    %1659 = vmatprep.subr.mxu0 0.0
    %1660 = vmatpush1.msra.mxu0 0.0
    %1661 = vmatprep.subr.mxu0 0.0
    %1662 = vmatpush1.msra.mxu0 0.0
    %1663 = vmatprep.subr.mxu0 0.0
    %1664 = vmatpush1.msra.mxu0 0.0
    %1665 = vmatprep.subr.mxu0 0.0
    %1666 = vmatpush1.msra.mxu0 0.0
    %1667 = vmatprep.subr.mxu0 0.0
    %1668 = vmatpush1.msra.mxu0 0.0
    %1669 = vmatprep.subr.mxu0 0.0
    %1670 = vmatpush1.msra.mxu0 0.0
    %1671 = vmatprep.subr.mxu0 0.0
    %1672 = vmatpush1.msra.mxu0 0.0
    %1673 = vmatprep.subr.mxu0 0.0
    %1674 = vmatpush1.msra.mxu0 0.0
    %1675 = vmatprep.subr.mxu0 0.0
    %1676 = vmatpush1.msra.mxu0 0.0
    %1677 = vmatprep.subr.mxu0 0.0
    %1678 = vmatpush1.msra.mxu0 0.0
    %1679 = vmatprep.subr.mxu0 0.0
    %1680 = vmatpush1.msra.mxu0 0.0
    %1681 = vmatprep.subr.mxu0 0.0
    %1682 = vmatpush1.msra.mxu0 0.0
    %1683 = vmatprep.subr.mxu0 0.0
    %1684 = vmatpush1.msra.mxu0 0.0
    %1685 = vmatprep.subr.mxu0 0.0
    %1686 = vmatpush1.msra.mxu0 0.0
    %1687 = vmatprep.subr.mxu0 0.0
    %1688 = vmatpush1.msra.mxu0 0.0
    %1689 = vmatprep.subr.mxu0 0.0
    %1690 = vmatpush1.msra.mxu0 0.0
    %1691 = vmatprep.subr.mxu0 0.0
    %1692 = vmatpush1.msra.mxu0 0.0
    %1693 = vmatprep.subr.mxu0 0.0
    %1694 = vmatpush1.msra.mxu0 0.0
    %1695 = vmatprep.mubr.f32.mxu0 0.0
    %1696 = vmatmul.mubr.f32.gmra.mrb[0].mxu0 %v1627
    %v1697 = vpop.f32.mrb[0].mxu0
    %v1698 = vadd.f32 0.0, %v1697
    %v1699 = vpop.f32.mrb[0].mxu0
    %1700 = vmatprep.mubr.f32.mxu0 0.0
    %1701 = vmatmul.mubr.f32.gmra.mrb[0].mxu0 %v1629
    %v1702 = vpop.f32.mrb[0].mxu0
    %v1703 = vadd.f32 0.0, %v1702
    %v1704 = vpop.f32.mrb[0].mxu0
    %1705 = vdwg.mxu0
    %v1714 = vcombine.low %v1560, %v1561
    %v1715 = vcombine.low %v1562, %v1563
    %v1717 = vunpack.c.l.s4 1983009808
    %v1718 = vunpack.c.0.s8 %v1717
    %v1719 = vlaneseq
    %v1720 = vshrl.u32 %v1719, 7
    %v1721 = vsub.s32 %v1718, %v1720
    %v1722 = vrot.slane %v1714, %v1721
    %v1724 = vunpack.c.l.s4 1983009808
    %v1725 = vunpack.c.0.s8 %v1724
    %v1726 = vlaneseq
    %v1727 = vshrl.u32 %v1726, 7
    %v1728 = vsub.s32 %v1725, %v1727
    %v1729 = vrot.slane %v1715, %v1728
    %v1730 = vcombine.low %v1722, %v1729
    %v1731 = vcombine.low %v1564, %v1565
    %v1732 = vcombine.low %v1566, %v1567
    %v1734 = vunpack.c.l.s4 1983009808
    %v1735 = vunpack.c.0.s8 %v1734
    %v1736 = vlaneseq
    %v1737 = vshrl.u32 %v1736, 7
    %v1738 = vsub.s32 %v1735, %v1737
    %v1739 = vrot.slane %v1731, %v1738
    %v1741 = vunpack.c.l.s4 1983009808
    %v1742 = vunpack.c.0.s8 %v1741
    %v1743 = vlaneseq
    %v1744 = vshrl.u32 %v1743, 7
    %v1745 = vsub.s32 %v1742, %v1744
    %v1746 = vrot.slane %v1732, %v1745
    %v1747 = vcombine.low %v1739, %v1746
    %v1748 = vsel %vm1626, %v1730, 0
    %v1750 = vsel %vm1626, %v1747, 0
    %1752 = vmatprep.subr.mxu0 0.0
    %1753 = vmatpush1.msra.mxu0 %v1576
    %1754 = vmatprep.subr.mxu0 0.0
    %1755 = vmatpush1.msra.mxu0 %v1577
    %1756 = vmatprep.subr.mxu0 0.0
    %1757 = vmatpush1.msra.mxu0 0.0
    %1758 = vmatprep.subr.mxu0 0.0
    %1759 = vmatpush1.msra.mxu0 0.0
    %1760 = vmatprep.subr.mxu0 0.0
    %1761 = vmatpush1.msra.mxu0 0.0
    %1762 = vmatprep.subr.mxu0 0.0
    %1763 = vmatpush1.msra.mxu0 0.0
    %1764 = vmatprep.subr.mxu0 0.0
    %1765 = vmatpush1.msra.mxu0 0.0
    %1766 = vmatprep.subr.mxu0 0.0
    %1767 = vmatpush1.msra.mxu0 0.0
    %1768 = vmatprep.subr.mxu0 0.0
    %1769 = vmatpush1.msra.mxu0 0.0
    %1770 = vmatprep.subr.mxu0 0.0
    %1771 = vmatpush1.msra.mxu0 0.0
    %1772 = vmatprep.subr.mxu0 0.0
    %1773 = vmatpush1.msra.mxu0 0.0
    %1774 = vmatprep.subr.mxu0 0.0
    %1775 = vmatpush1.msra.mxu0 0.0
    %1776 = vmatprep.subr.mxu0 0.0
    %1777 = vmatpush1.msra.mxu0 0.0
    %1778 = vmatprep.subr.mxu0 0.0
    %1779 = vmatpush1.msra.mxu0 0.0
    %1780 = vmatprep.subr.mxu0 0.0
    %1781 = vmatpush1.msra.mxu0 0.0
    %1782 = vmatprep.subr.mxu0 0.0
    %1783 = vmatpush1.msra.mxu0 0.0
    %1784 = vmatprep.subr.mxu0 0.0
    %1785 = vmatpush1.msra.mxu0 0.0
    %1786 = vmatprep.subr.mxu0 0.0
    %1787 = vmatpush1.msra.mxu0 0.0
    %1788 = vmatprep.subr.mxu0 0.0
    %1789 = vmatpush1.msra.mxu0 0.0
    %1790 = vmatprep.subr.mxu0 0.0
    %1791 = vmatpush1.msra.mxu0 0.0
    %1792 = vmatprep.subr.mxu0 0.0
    %1793 = vmatpush1.msra.mxu0 0.0
    %1794 = vmatprep.subr.mxu0 0.0
    %1795 = vmatpush1.msra.mxu0 0.0
    %1796 = vmatprep.subr.mxu0 0.0
    %1797 = vmatpush1.msra.mxu0 0.0
    %1798 = vmatprep.subr.mxu0 0.0
    %1799 = vmatpush1.msra.mxu0 0.0
    %1800 = vmatprep.subr.mxu0 0.0
    %1801 = vmatpush1.msra.mxu0 0.0
    %1802 = vmatprep.subr.mxu0 0.0
    %1803 = vmatpush1.msra.mxu0 0.0
    %1804 = vmatprep.subr.mxu0 0.0
    %1805 = vmatpush1.msra.mxu0 0.0
    %1806 = vmatprep.subr.mxu0 0.0
    %1807 = vmatpush1.msra.mxu0 0.0
    %1808 = vmatprep.subr.mxu0 0.0
    %1809 = vmatpush1.msra.mxu0 0.0
    %1810 = vmatprep.subr.mxu0 0.0
    %1811 = vmatpush1.msra.mxu0 0.0
    %1812 = vmatprep.subr.mxu0 0.0
    %1813 = vmatpush1.msra.mxu0 0.0
    %1814 = vmatprep.subr.mxu0 0.0
    %1815 = vmatpush1.msra.mxu0 0.0
    %1816 = vmatprep.mubr.f32.mxu0 0.0
    %1817 = vmatmul.mubr.f32.gmra.mrb[0].mxu0 %v1748
    %v1818 = vpop.f32.mrb[0].mxu0
    %v1819 = vadd.f32 %v1698, %v1818
    %v1820 = vpop.f32.mrb[0].mxu0
    %1821 = vmatprep.mubr.f32.mxu0 0.0
    %1822 = vmatmul.mubr.f32.gmra.mrb[0].mxu0 %v1750
    %v1823 = vpop.f32.mrb[0].mxu0
    %v1824 = vadd.f32 %v1703, %v1823
    %v1825 = vpop.f32.mrb[0].mxu0
    %1826 = vdwg.mxu0
    %v1827 = vld [vmem:[%s6] sm:$0x1]
    %v1829 = vlaneseq
    %v1830 = vshrl.u32 %v1829, 7
    %v1831 = vsub.s32 0, %v1830
    %v1832 = vrot.slane %v1827, %v1831
    %v1834 = vadd.f32 %v1819, %v1832
    %v1835 = vadd.f32 %v1824, %v1832
    %1836 = vst [vmem:[#allocation12] sm:$0xff] %v1834
    %1837 = vst [vmem:[#allocation12 + $0x8] sm:$0xff] %v1835
    // Predicated region
    $region46: #{tpu_custom_call.1} parent=1 // pred_check
      _
    $region47: #{tpu_custom_call.1} parent=1 // pred_check_branch
      %1839 = sbr.rel (0) target = $region49
    $region48: #{tpu_custom_call.1} parent=1 // pred_region
      %s1841 = ssub.s32 256, 256
      %1842 = vsyncadd [#allocation6], %s1841
      %s1843 = sshll.u32 [#allocation12], 4
      %s1844 = int_to_ptr.vmem [resolvable:$true] %s1843
      %1849 = dma.vmem_to_hbm [thread:$0]  %s1844, 256, %s7, [#allocation6], 128, 128, 8
    $region49: #{tpu_custom_call.1} parent=1 // pred_fallthru
      _
    // Predicated region
    $region50: #{tpu_custom_call.1} parent=1 // pred_check
      _
    $region51: #{tpu_custom_call.1} parent=1 // pred_check_branch
      %1851 = sbr.rel (0) target = $region53
    $region52: #{tpu_custom_call.1} parent=1 // pred_region
      %1852 = dma.done [#allocation6], 256
    $region53: #{tpu_custom_call.1} parent=1 // pred_fallthru
      _
    %1853 = vsyncpa [#allocation5], 1
    %1854 = vsyncpa [#allocation8], 1
    %1855 = vsyncpa [#allocation11], 1
    %1856 = vsyncpa [#allocation6], 1

</llo_original>
